<compile_context>
chip_gen: v7x
topology: tpu7x:2x2x1
jax: 0.10.0
libtpu: 0.0.40
codegen_flags: <defaults>
</compile_context>

<pallas_src>
import numpy as np
import jax
import jax.numpy as jnp
from jax.experimental import pallas as pl
from jax.experimental.pallas import tpu as pltpu

BUCKET_BINS = [0, 1, 2, 3, 4, 5, 7, 8, 9, 10, 15, 16, 31, 32, 63, 64]
POS_NUM = 30          # stand-in for ZHPosTaging.pos_num (table has POS_NUM + 1 rows)
SPAN_TILE = 256       # max spans per grid step (matches v6e/v7x 256-row MXU)
_TILE_BUCKETS = (8, 32, 128, 256)


def _round_up(x, m):
    return (x + m - 1) // m * m


def span_representation(x, spans_indices, span_pt_labels,
                        width_emb_table, pos_emb_table, *, span_tile=SPAN_TILE):
    """Pallas equivalent of SpanRepresentation.forward.

    x: (B, S, H) float32 -> (B, n_spans, 3H + 2P + W) with columns
    [mean, x[:, s0], pos_emb(pt[s0]), x[:, s1], pos_emb(pt[s1]), width_emb].
    """
    B, S, H = x.shape
    n_buckets, Wd = width_emb_table.shape
    n_pos, Pd = pos_emb_table.shape
    D = 3 * H + 2 * Pd + Wd

    # ---------- host: compact per-span metadata (no dense masks) -------------
    spans = np.asarray(spans_indices[0], dtype=np.int32).reshape(-1, 2)
    labels = np.asarray(span_pt_labels[0], dtype=np.int32)
    n_spans = spans.shape[0]
    s0, s1 = spans[:, 0], spans[:, 1]
    assert np.all((s0 >= 0) & (s1 < S)), "span indices out of range"
    assert np.all(s0 <= s1), "spans must satisfy s0 <= s1 (torch ref would NaN)"
    assert np.all((labels >= 0) & (labels < n_pos)), "POS label out of table range"

    widths = s1 - s0 + 1
    wbucket = (np.searchsorted(np.asarray(BUCKET_BINS), widths, side="right")
               - 1).astype(np.int32)
    pt0, pt1 = labels[s0], labels[s1]

    # Bucketed tile size -> only a handful of distinct compiled shapes.
    cap = int(max(8, min(span_tile, _TILE_BUCKETS[-1])))
    tile = cap
    for t in _TILE_BUCKETS:
        if t > cap:
            break
        if t >= n_spans:
            tile = t
            break
    n_pad = _round_up(n_spans, tile)
    n_tiles = n_pad // tile

    meta = np.zeros((n_pad, 8), np.int32)   # cols: [s0, s1, wbucket, pt0, pt1, 0, 0, 0]
    meta[:n_spans, 0] = s0
    meta[:n_spans, 1] = s1
    meta[:n_spans, 2] = wbucket
    meta[:n_spans, 3] = pt0
    meta[:n_spans, 4] = pt1

    # Block-diagonal embedding table so [pos_emb0 | pos_emb1 | width_emb] comes
    # out of a single (T, K) x (K, 2P+W) matmul.
    npos_pad = _round_up(n_pos, 8)
    nbuck_pad = _round_up(n_buckets, 8)
    k_emb = 2 * npos_pad + nbuck_pad
    e_dim = 2 * Pd + Wd
    pemb = jnp.pad(pos_emb_table.astype(x.dtype), ((0, npos_pad - n_pos), (0, 0)))
    wemb = jnp.pad(width_emb_table.astype(x.dtype), ((0, nbuck_pad - n_buckets), (0, 0)))
    tbl = jnp.zeros((k_emb, e_dim), x.dtype)
    tbl = tbl.at[0:npos_pad, 0:Pd].set(pemb)
    tbl = tbl.at[npos_pad:2 * npos_pad, Pd:2 * Pd].set(pemb)
    tbl = tbl.at[2 * npos_pad:, 2 * Pd:].set(wemb)

    T = tile
    HIGH = jax.lax.Precision.HIGHEST

    def kernel(x_ref, meta_ref, tbl_ref, out_ref):
        f32 = jnp.float32
        x_b = x_ref[0]                                    # (S, H)
        meta_t = meta_ref[...]                            # (T, 8) int32
        sp0 = meta_t[:, 0:1]
        sp1 = meta_t[:, 1:2]
        wb = meta_t[:, 2:3]
        p0 = meta_t[:, 3:4]
        p1 = meta_t[:, 4:5]

        # (T, S) operands built in-kernel: scaled membership + endpoint one-hots.
        pos = jax.lax.broadcasted_iota(jnp.int32, (T, S), 1)
        inv_w = 1.0 / (sp1 - sp0 + 1).astype(f32)         # (T, 1), exact divide
        w_mean = jnp.where((pos >= sp0) & (pos <= sp1), inv_w, 0.0)
        w_s0 = (pos == sp0).astype(f32)
        w_s1 = (pos == sp1).astype(f32)

        # Single (3T, S) x (S, H) MXU matmul; slice at sublane-aligned offsets.
        lhs = jnp.concatenate([w_mean, w_s0, w_s1], axis=0)
        g = jnp.dot(lhs, x_b, preferred_element_type=f32, precision=HIGH)
        mean_x = g[0:T]
        x_start = g[T:2 * T]
        x_end = g[2 * T:3 * T]

        # Fused embedding lookup against the block-diagonal table.
        col = jax.lax.broadcasted_iota(jnp.int32, (T, k_emb), 1)
        sel = ((col == p0)
               | (col == p1 + npos_pad)
               | (col == wb + 2 * npos_pad)).astype(f32)
        emb = jnp.dot(sel, tbl_ref[...], preferred_element_type=f32,
                      precision=HIGH)                     # (T, 2P + W)

        # Direct static-offset stores in the module's column order
        # (no jnp.concatenate / no (T, D) VMEM temporary).
        dt = out_ref.dtype
        out_ref[0, :, 0:H] = mean_x.astype(dt)
        out_ref[0, :, H:2 * H] = x_start.astype(dt)
        out_ref[0, :, 2 * H:2 * H + Pd] = emb[:, 0:Pd].astype(dt)
        out_ref[0, :, 2 * H + Pd:3 * H + Pd] = x_end.astype(dt)
        out_ref[0, :, 3 * H + Pd:3 * H + 2 * Pd] = emb[:, Pd:2 * Pd].astype(dt)
        out_ref[0, :, 3 * H + 2 * Pd:D] = emb[:, 2 * Pd:e_dim].astype(dt)

    out = pl.pallas_call(
        kernel,
        out_shape=jax.ShapeDtypeStruct((B, n_pad, D), x.dtype),
        grid=(B, n_tiles),
        in_specs=[
            pl.BlockSpec((1, S, H), lambda b, i: (b, 0, 0)),      # x (resident per b)
            pl.BlockSpec((tile, 8), lambda b, i: (i, 0)),         # span metadata
            pl.BlockSpec((k_emb, e_dim), lambda b, i: (0, 0)),    # block-diag emb table
        ],
        out_specs=pl.BlockSpec((1, tile, D), lambda b, i: (b, i, 0)),
        compiler_params=pltpu.CompilerParams(
            dimension_semantics=("parallel", "parallel")),
    )(x, jnp.asarray(meta), tbl)

    return out[:, :n_spans, :] if n_pad != n_spans else out


def _reference(x, spans_indices, span_pt_labels, width_emb_table, pos_emb_table):
    x = np.asarray(x)
    wt = np.asarray(width_emb_table)
    pt = np.asarray(pos_emb_table)
    B, S, H = x.shape
    outs = []
    for s in spans_indices[0]:
        s0, s1 = int(s[0]), int(s[1])
        width = abs(s1 - s0 + 1)
        wb = [ix for ix, v in enumerate(BUCKET_BINS) if width >= v][-1]
        pe0 = np.broadcast_to(pt[span_pt_labels[0][s0]], (B, pt.shape[1]))
        pe1 = np.broadcast_to(pt[span_pt_labels[0][s1]], (B, pt.shape[1]))
        we = np.broadcast_to(wt[wb], (B, wt.shape[1]))
        mean_vec = x[:, s0:s1 + 1, :].mean(axis=1)
        outs.append(np.concatenate(
            [mean_vec, x[:, s0, :], pe0, x[:, s1, :], pe1, we], axis=-1))
    return np.stack(outs, axis=1)


if __name__ == "__main__":
    key = jax.random.PRNGKey(0)
    B, S, H = 2, 8, 32
    WIDTH_DIM, POS_DIM = 8, 16

    k1, k2, k3 = jax.random.split(key, 3)
    x = jax.random.normal(k1, (B, S, H), dtype=jnp.float32)
    width_emb_table = jax.random.normal(k2, (len(BUCKET_BINS), WIDTH_DIM),
                                        dtype=jnp.float32)
    pos_emb_table = jax.random.normal(k3, (POS_NUM + 1, POS_DIM),
                                      dtype=jnp.float32)

    spans_indices = [[(0, 2), (1, 4), (3, 3), (2, 7), (5, 6)]]
    span_pt_labels = [[3, 7, 1, 0, 12, 5, 30, 9]]

    out = span_representation(x, spans_indices, span_pt_labels,
                              width_emb_table, pos_emb_table)
    out = jax.block_until_ready(out)

    ref = _reference(x, spans_indices, span_pt_labels,
                     width_emb_table, pos_emb_table)
    assert out.shape == ref.shape, (out.shape, ref.shape)
    np.testing.assert_allclose(np.asarray(out), ref, rtol=1e-5, atol=1e-5)
    print("KERNEL_OK")
</pallas_src>

<mosaic_0001>
module attributes {stable_mosaic.version = 11 : i64} {
  func.func @kernel(%arg0: i32, %arg1: i32, %arg2: memref<1x8x32xf32, #tpu.memory_space<vmem>>, %arg3: memref<8x8xi32, #tpu.memory_space<vmem>>, %arg4: memref<80x40xf32, #tpu.memory_space<vmem>>, %arg5: memref<1x8x136xf32, #tpu.memory_space<vmem>>) attributes {dimension_semantics = [#tpu.dimension_semantics<parallel>, #tpu.dimension_semantics<parallel>], iteration_bounds = array<i64: 2, 1>, scalar_prefetch = 0 : i64, scratch_operands = 0 : i64, tpu.core_type = #tpu.core_type<tc>, window_params = [{transform_indices = @transform_0, window_bounds = array<i64: 1, 8, 32>}, {transform_indices = @transform_1, window_bounds = array<i64: 8, 8>}, {pipeline_mode = #tpu.pipeline_mode<synchronous>, transform_indices = @transform_2, window_bounds = array<i64: 80, 40>}, {transform_indices = @transform_3, window_bounds = array<i64: 1, 8, 136>}]} {
    %c0 = arith.constant 0 : index
    %c0_0 = arith.constant 0 : index
    %c0_1 = arith.constant 0 : index
    %0 = vector.load %arg2[%c0, %c0_0, %c0_1] : memref<1x8x32xf32, #tpu.memory_space<vmem>>, vector<1x8x32xf32>
    %1 = vector.shape_cast %0 : vector<1x8x32xf32> to vector<8x32xf32>
    %c0_2 = arith.constant 0 : index
    %c0_3 = arith.constant 0 : index
    %2 = vector.load %arg3[%c0_2, %c0_3] : memref<8x8xi32, #tpu.memory_space<vmem>>, vector<8x8xi32>
    %3 = vector.extract_strided_slice %2 {offsets = [0, 0], sizes = [8, 1], strides = [1, 1]} : vector<8x8xi32> to vector<8x1xi32>
    %4 = vector.extract_strided_slice %2 {offsets = [0, 1], sizes = [8, 1], strides = [1, 1]} : vector<8x8xi32> to vector<8x1xi32>
    %5 = vector.extract_strided_slice %2 {offsets = [0, 2], sizes = [8, 1], strides = [1, 1]} : vector<8x8xi32> to vector<8x1xi32>
    %6 = vector.extract_strided_slice %2 {offsets = [0, 3], sizes = [8, 1], strides = [1, 1]} : vector<8x8xi32> to vector<8x1xi32>
    %7 = vector.extract_strided_slice %2 {offsets = [0, 4], sizes = [8, 1], strides = [1, 1]} : vector<8x8xi32> to vector<8x1xi32>
    %8 = tpu.iota {dimensions = array<i32: 1>} : vector<8x8xi32>
    %9 = arith.subi %4, %3 : vector<8x1xi32>
    %c1_i32 = arith.constant 1 : i32
    %10 = vector.broadcast %c1_i32 : i32 to vector<8x1xi32>
    %11 = arith.addi %9, %10 : vector<8x1xi32>
    %12 = arith.sitofp %11 : vector<8x1xi32> to vector<8x1xf32>
    %cst = arith.constant 1.000000e+00 : f32
    %13 = vector.broadcast %cst : f32 to vector<8x1xf32>
    %14 = arith.divf %13, %12 : vector<8x1xf32>
    %15 = vector.broadcast %3 : vector<8x1xi32> to vector<8x8xi32>
    %16 = arith.cmpi sge, %8, %15 : vector<8x8xi32>
    %17 = vector.broadcast %4 : vector<8x1xi32> to vector<8x8xi32>
    %18 = arith.cmpi sle, %8, %17 : vector<8x8xi32>
    %19 = arith.andi %16, %18 : vector<8x8xi1>
    %cst_4 = arith.constant 0.000000e+00 : f32
    %20 = vector.shape_cast %14 : vector<8x1xf32> to vector<8x1xf32>
    %21 = vector.broadcast %20 : vector<8x1xf32> to vector<8x8xf32>
    %22 = vector.broadcast %cst_4 : f32 to vector<8x8xf32>
    %23 = arith.select %19, %21, %22 : vector<8x8xi1>, vector<8x8xf32>
    %24 = vector.broadcast %3 : vector<8x1xi32> to vector<8x8xi32>
    %25 = arith.cmpi eq, %8, %24 : vector<8x8xi32>
    %26 = arith.extui %25 : vector<8x8xi1> to vector<8x8xi32>
    %27 = arith.sitofp %26 : vector<8x8xi32> to vector<8x8xf32>
    %28 = vector.broadcast %4 : vector<8x1xi32> to vector<8x8xi32>
    %29 = arith.cmpi eq, %8, %28 : vector<8x8xi32>
    %30 = arith.extui %29 : vector<8x8xi1> to vector<8x8xi32>
    %31 = arith.sitofp %30 : vector<8x8xi32> to vector<8x8xf32>
    %32 = tpu.concatenate %23, %27, %31 in 0 : vector<8x8xf32>, vector<8x8xf32>, vector<8x8xf32> -> vector<24x8xf32>
    %cst_5 = arith.constant dense<0.000000e+00> : vector<24x32xf32>
    %33 = tpu.matmul %32, %1, %cst_5 {dimension_numbers = #tpu.dot_dimension_numbers<[1], [0], [0], [1], [0, 0, 1, 1], [], []>, precision = #tpu.contract_precision<fp32>} : vector<24x8xf32>, vector<8x32xf32>, vector<24x32xf32> -> vector<24x32xf32>
    %34 = vector.extract_strided_slice %33 {offsets = [0, 0], sizes = [8, 32], strides = [1, 1]} : vector<24x32xf32> to vector<8x32xf32>
    %35 = vector.extract_strided_slice %33 {offsets = [8, 0], sizes = [8, 32], strides = [1, 1]} : vector<24x32xf32> to vector<8x32xf32>
    %36 = vector.extract_strided_slice %33 {offsets = [16, 0], sizes = [8, 32], strides = [1, 1]} : vector<24x32xf32> to vector<8x32xf32>
    %37 = tpu.iota {dimensions = array<i32: 1>} : vector<8x80xi32>
    %38 = vector.broadcast %6 : vector<8x1xi32> to vector<8x80xi32>
    %39 = arith.cmpi eq, %37, %38 : vector<8x80xi32>
    %c32_i32 = arith.constant 32 : i32
    %40 = vector.broadcast %c32_i32 : i32 to vector<8x1xi32>
    %41 = arith.addi %7, %40 : vector<8x1xi32>
    %42 = vector.broadcast %41 : vector<8x1xi32> to vector<8x80xi32>
    %43 = arith.cmpi eq, %37, %42 : vector<8x80xi32>
    %44 = arith.ori %39, %43 : vector<8x80xi1>
    %c64_i32 = arith.constant 64 : i32
    %45 = vector.broadcast %c64_i32 : i32 to vector<8x1xi32>
    %46 = arith.addi %5, %45 : vector<8x1xi32>
    %47 = vector.broadcast %46 : vector<8x1xi32> to vector<8x80xi32>
    %48 = arith.cmpi eq, %37, %47 : vector<8x80xi32>
    %49 = arith.ori %44, %48 : vector<8x80xi1>
    %50 = arith.extui %49 : vector<8x80xi1> to vector<8x80xi32>
    %51 = arith.sitofp %50 : vector<8x80xi32> to vector<8x80xf32>
    %c0_6 = arith.constant 0 : index
    %c0_7 = arith.constant 0 : index
    %52 = vector.load %arg4[%c0_6, %c0_7] : memref<80x40xf32, #tpu.memory_space<vmem>>, vector<80x40xf32>
    %cst_8 = arith.constant dense<0.000000e+00> : vector<8x40xf32>
    %53 = tpu.matmul %51, %52, %cst_8 {dimension_numbers = #tpu.dot_dimension_numbers<[1], [0], [0], [1], [0, 0, 1, 1], [], []>, precision = #tpu.contract_precision<fp32>} : vector<8x80xf32>, vector<80x40xf32>, vector<8x40xf32> -> vector<8x40xf32>
    %c0_9 = arith.constant 0 : index
    %c0_10 = arith.constant 0 : index
    %c0_11 = arith.constant 0 : index
    %54 = vector.load %arg5[%c0_9, %c0_10, %c0_11] : memref<1x8x136xf32, #tpu.memory_space<vmem>>, vector<1x8x32xf32>
    %55 = vector.shape_cast %54 : vector<1x8x32xf32> to vector<8x32xf32>
    %56 = vector.shape_cast %34 : vector<8x32xf32> to vector<1x8x32xf32>
    tpu.vector_store %arg5[%c0_9, %c0_10, %c0_11], %56 {strides = array<i32>} : memref<1x8x136xf32, #tpu.memory_space<vmem>>, vector<1x8x32xf32>,
    %c0_12 = arith.constant 0 : index
    %c0_13 = arith.constant 0 : index
    %c32 = arith.constant 32 : index
    %57 = vector.load %arg5[%c0_12, %c0_13, %c32] : memref<1x8x136xf32, #tpu.memory_space<vmem>>, vector<1x8x32xf32>
    %58 = vector.shape_cast %57 : vector<1x8x32xf32> to vector<8x32xf32>
    %59 = vector.shape_cast %35 : vector<8x32xf32> to vector<1x8x32xf32>
    tpu.vector_store %arg5[%c0_12, %c0_13, %c32], %59 {strides = array<i32>} : memref<1x8x136xf32, #tpu.memory_space<vmem>>, vector<1x8x32xf32>,
    %60 = vector.extract_strided_slice %53 {offsets = [0, 0], sizes = [8, 16], strides = [1, 1]} : vector<8x40xf32> to vector<8x16xf32>
    %c0_14 = arith.constant 0 : index
    %c0_15 = arith.constant 0 : index
    %c64 = arith.constant 64 : index
    %61 = vector.load %arg5[%c0_14, %c0_15, %c64] : memref<1x8x136xf32, #tpu.memory_space<vmem>>, vector<1x8x16xf32>
    %62 = vector.shape_cast %61 : vector<1x8x16xf32> to vector<8x16xf32>
    %63 = vector.shape_cast %60 : vector<8x16xf32> to vector<1x8x16xf32>
    tpu.vector_store %arg5[%c0_14, %c0_15, %c64], %63 {strides = array<i32>} : memref<1x8x136xf32, #tpu.memory_space<vmem>>, vector<1x8x16xf32>,
    %c0_16 = arith.constant 0 : index
    %c0_17 = arith.constant 0 : index
    %c80 = arith.constant 80 : index
    %64 = vector.load %arg5[%c0_16, %c0_17, %c80] : memref<1x8x136xf32, #tpu.memory_space<vmem>>, vector<1x8x32xf32>
    %65 = vector.shape_cast %64 : vector<1x8x32xf32> to vector<8x32xf32>
    %66 = vector.shape_cast %36 : vector<8x32xf32> to vector<1x8x32xf32>
    tpu.vector_store %arg5[%c0_16, %c0_17, %c80], %66 {strides = array<i32>} : memref<1x8x136xf32, #tpu.memory_space<vmem>>, vector<1x8x32xf32>,
    %67 = vector.extract_strided_slice %53 {offsets = [0, 16], sizes = [8, 16], strides = [1, 1]} : vector<8x40xf32> to vector<8x16xf32>
    %c0_18 = arith.constant 0 : index
    %c0_19 = arith.constant 0 : index
    %c112 = arith.constant 112 : index
    %68 = vector.load %arg5[%c0_18, %c0_19, %c112] : memref<1x8x136xf32, #tpu.memory_space<vmem>>, vector<1x8x16xf32>
    %69 = vector.shape_cast %68 : vector<1x8x16xf32> to vector<8x16xf32>
    %70 = vector.shape_cast %67 : vector<8x16xf32> to vector<1x8x16xf32>
    tpu.vector_store %arg5[%c0_18, %c0_19, %c112], %70 {strides = array<i32>} : memref<1x8x136xf32, #tpu.memory_space<vmem>>, vector<1x8x16xf32>,
    %71 = vector.extract_strided_slice %53 {offsets = [0, 32], sizes = [8, 8], strides = [1, 1]} : vector<8x40xf32> to vector<8x8xf32>
    %c0_20 = arith.constant 0 : index
    %c0_21 = arith.constant 0 : index
    %c128 = arith.constant 128 : index
    %72 = vector.load %arg5[%c0_20, %c0_21, %c128] : memref<1x8x136xf32, #tpu.memory_space<vmem>>, vector<1x8x8xf32>
    %73 = vector.shape_cast %72 : vector<1x8x8xf32> to vector<8x8xf32>
    %74 = vector.shape_cast %71 : vector<8x8xf32> to vector<1x8x8xf32>
    tpu.vector_store %arg5[%c0_20, %c0_21, %c128], %74 {strides = array<i32>} : memref<1x8x136xf32, #tpu.memory_space<vmem>>, vector<1x8x8xf32>,
    return
  }
  func.func @transform_0(%arg0: i32, %arg1: i32) -> (i32, i32, i32) {
    %c0_i32 = arith.constant 0 : i32
    %c0_i32_0 = arith.constant 0 : i32
    %c0_i32_1 = arith.constant 0 : i32
    return %arg0, %c0_i32, %c0_i32_0 : i32, i32, i32
  }
  func.func @transform_1(%arg0: i32, %arg1: i32) -> (i32, i32) {
    %c0_i32 = arith.constant 0 : i32
    %c0_i32_0 = arith.constant 0 : i32
    return %arg1, %c0_i32 : i32, i32
  }
  func.func @transform_2(%arg0: i32, %arg1: i32) -> (i32, i32) {
    %c0_i32 = arith.constant 0 : i32
    %c0_i32_0 = arith.constant 0 : i32
    %c0_i32_1 = arith.constant 0 : i32
    return %c0_i32, %c0_i32_0 : i32, i32
  }
  func.func @transform_3(%arg0: i32, %arg1: i32) -> (i32, i32, i32) {
    %c0_i32 = arith.constant 0 : i32
    %c0_i32_0 = arith.constant 0 : i32
    return %arg0, %arg1, %c0_i32 : i32, i32, i32
  }
}

</mosaic_0001>

<llo_original>
// kernel: tpu_custom_call.1
$region0: #{tpu_custom_call.1}
  #allocation0 [shape = 'u32[]', space=smem, size = 0x4, offset = 0x4, fixed_abs, tag = 'smem constant byte address 0x4 - core index']
  #allocation1 [shape = 'u32[144,128]{1,0:T(1,128)}', space=vmem, size = 0x12000, scoped, tag = 'internal scratch']
  %s0 = inlined_call_operand.vmem [shape: f32[2,8,32], index: 0, kind: input, shape index: {}]
  %s1 = inlined_call_operand.vmem [shape: s32[8,8], index: 1, kind: input, shape index: {}]
  %s2 = inlined_call_operand.vmem [shape: f32[80,40], index: 2, kind: input, shape index: {}]
  %s3 = inlined_call_operand.hbm [shape: f32[2,8,136], index: 3, kind: output, shape index: {}]
  %s4 = sld [smem:[#allocation0]]
  $region45: #{tpu_custom_call.1} parent=0
    _
  %s6 = ssub.s32 1, %s4
  %s7 = scalar_select 0, %s6, %s4
  $region1: #{tpu_custom_call.1} parent=0
    #allocation2 [shape = 'u8[16384]{0}', space=vmem, size = 0x4000, scoped, tag = 'output window, operand 0']
    #allocation3 [shape = 's32[2]{0}', space=sflag, size = 0x8, scoped, tag = 'scoped memory for tpu_custom_call.1']
    %8 = vsyncpa [#allocation3], 0
    %s9 = scalar_lea.sflag [#allocation3], 1
    %10 = vsyncpa %s9, 0
    loop: start=0, step=1, limit=4
    $region2: #{tpu_custom_call.1} parent=1 // loop_pre_header
      _
    $region3: #{tpu_custom_call.1} parent=1 // loop_header
      %s12 = sphi 0, %s16
      %p13 = scmp.ge.s32.totalorder %s12, 4
      %s19 = sphi 0, %s31
      %s20 = sphi 0, %s27
      %s21 = sphi 0, %s19
      %s22 = sphi 0, %s20
      %s23 = sphi 0, %s21
      %s24 = sphi 0, %s22
      %s34 = sphi 0, %s36
      %s37 = sphi 0, %s34
      %s38 = sphi 0, %s37
      %s54 = sphi 0, %s38
      %s60 = sphi 0, %s62
      %s63 = sphi 0, %s60
      %s64 = sphi 0, %s63
      %s80 = sphi 0, %s64
      %s84 = sphi 0, %s84
      %s86 = sphi 0, %s84
      %s87 = sphi 0, %s86
      %s101 = sphi 0, %s87
      %s109 = sphi 0, %s111
      %s112 = sphi 0, %s109
      %s113 = sphi 0, %s112
      %s129 = sphi 0, %s113
    $region4: #{tpu_custom_call.1} parent=1 // loop_header_branch
      %15 = sbr.rel (%p13) target = $region8
    $region5: #{tpu_custom_call.1} parent=1 // loop_body
      %s17 = ssub.s32 %s12, 1
      %s18 = ssub.s32 %s12, 2
      %s25 = sadd.s32 1, %s20
      %p26 = scmp.ge.s32.totalorder %s25, 1
      %s27 = scalar_select %p26, 0, %s25
      %s28 = sadd.s32 1, %s19
      %s29 = scalar_select %p26, %s28, %s19
      %p30 = scmp.ge.s32.totalorder %s29, 2
      %s31 = scalar_select %p30, 0, %s29
      %s32 = ssub.s32 %s19, %s31
      %p33 = scmp.eq.s32.totalorder %s32, 0
      %s35 = sadd.s32 %s34, 1
      %s36 = scalar_select %p33, %s34, %s35
      %p39 = pneg %p33
      %p40 = scmp.eq.s32.totalorder %s12, 1
      %p41 = por %p39, %p40
      %p42 = scmp.ne.s32.totalorder %s34, %s37
      %p43 = scmp.eq.s32.totalorder %s12, 0
      %p44 = por %p42, %p43
      %p45 = scmp.ne.s32.totalorder %s34, %s37
      %p46 = scmp.eq.s32.totalorder %s17, 1
      %p47 = por %p45, %p46
      %p48 = scmp.ne.s32.totalorder %s37, %s38
      %p49 = scmp.eq.s32.totalorder %s17, 0
      %p50 = por %p48, %p49
      %p51 = scmp.ne.s32.totalorder %s37, %s38
      %p52 = scmp.eq.s32.totalorder %s18, 1
      %p53 = por %p51, %p52
      %p55 = scmp.ne.s32.totalorder %s38, %s54
      %p56 = scmp.eq.s32.totalorder %s18, 0
      %p57 = por %p55, %p56
      %s58 = ssub.s32 %s20, %s27
      %p59 = scmp.eq.s32.totalorder %s58, 0
      %s61 = sadd.s32 %s60, 1
      %s62 = scalar_select %p59, %s60, %s61
      %p65 = pneg %p59
      %p66 = scmp.eq.s32.totalorder %s12, 1
      %p67 = por %p65, %p66
      %p68 = scmp.ne.s32.totalorder %s60, %s63
      %p69 = scmp.eq.s32.totalorder %s12, 0
      %p70 = por %p68, %p69
      %p71 = scmp.ne.s32.totalorder %s60, %s63
      %p72 = scmp.eq.s32.totalorder %s17, 1
      %p73 = por %p71, %p72
      %p74 = scmp.ne.s32.totalorder %s63, %s64
      %p75 = scmp.eq.s32.totalorder %s17, 0
      %p76 = por %p74, %p75
      %p77 = scmp.ne.s32.totalorder %s63, %s64
      %p78 = scmp.eq.s32.totalorder %s18, 1
      %p79 = por %p77, %p78
      %p81 = scmp.ne.s32.totalorder %s64, %s80
      %p82 = scmp.eq.s32.totalorder %s18, 0
      %p83 = por %p81, %p82
      %s85 = sadd.s32 %s84, 1
      %p88 = scmp.eq.s32.totalorder %s12, 1
      %p89 = scmp.ne.s32.totalorder %s84, %s86
      %p90 = scmp.eq.s32.totalorder %s12, 0
      %p91 = por %p89, %p90
      %p92 = scmp.ne.s32.totalorder %s84, %s86
      %p93 = scmp.eq.s32.totalorder %s17, 1
      %p94 = por %p92, %p93
      %p95 = scmp.ne.s32.totalorder %s86, %s87
      %p96 = scmp.eq.s32.totalorder %s17, 0
      %p97 = por %p95, %p96
      %p98 = scmp.ne.s32.totalorder %s86, %s87
      %p99 = scmp.eq.s32.totalorder %s18, 1
      %p100 = por %p98, %p99
      %p102 = scmp.ne.s32.totalorder %s87, %s101
      %p103 = scmp.eq.s32.totalorder %s18, 0
      %p104 = por %p102, %p103
      %s105 = ssub.s32 %s19, %s31
      %s106 = ssub.s32 %s20, %s27
      %s107 = sor.u32 %s105, %s106
      %p108 = scmp.eq.s32.totalorder %s107, 0
      %s110 = sadd.s32 %s109, 1
      %s111 = scalar_select %p108, %s109, %s110
      %p114 = pneg %p108
      %p115 = scmp.eq.s32.totalorder %s12, 1
      %p116 = por %p114, %p115
      %p117 = scmp.ne.s32.totalorder %s109, %s112
      %p118 = scmp.eq.s32.totalorder %s12, 0
      %p119 = por %p117, %p118
      %p120 = scmp.ne.s32.totalorder %s109, %s112
      %p121 = scmp.eq.s32.totalorder %s17, 1
      %p122 = por %p120, %p121
      %p123 = scmp.ne.s32.totalorder %s112, %s113
      %p124 = scmp.eq.s32.totalorder %s17, 0
      %p125 = por %p123, %p124
      %p126 = scmp.ne.s32.totalorder %s112, %s113
      %p127 = scmp.eq.s32.totalorder %s18, 1
      %p128 = por %p126, %p127
      %p130 = scmp.ne.s32.totalorder %s113, %s129
      %p131 = scmp.eq.s32.totalorder %s18, 0
      %p132 = por %p130, %p131
      %p133 = scmp.le.s32.totalorder 1, %s12
      %p134 = scmp.lt.s32.totalorder %s12, 3
      %p135 = pnand %p133, %p134
      %p136 = pneg %p135
      // Predicated region
      $region9: #{tpu_custom_call.1} parent=5 // pred_check
        _
      $region10: #{tpu_custom_call.1} parent=5 // pred_check_branch
        %138 = sbr.rel (%p135) target = $region12
      $region11: #{tpu_custom_call.1} parent=5 // pred_region
        %s139 = ssub.s32 %s12, 1
        // Predicated region
        $region13: #{tpu_custom_call.1} parent=11 // pred_check
          %p140 = pneg %p76
        $region14: #{tpu_custom_call.1} parent=11 // pred_check_branch
          %142 = sbr.rel (%p140) target = $region16
        $region15: #{tpu_custom_call.1} parent=11 // pred_region
          %p143 = scmp.lt.s32.totalorder %s22, 0
          %s144 = scalar_select %p143, %s22, 0
          %s145 = smul.addr %s144, 8
          %s146 = scalar_lea.vmem %s1, %s145
        $region16: #{tpu_custom_call.1} parent=11 // pred_fallthru
          _
        // Predicated region
        $region17: #{tpu_custom_call.1} parent=11 // pred_check
          %p147 = pneg %p97
        $region18: #{tpu_custom_call.1} parent=11 // pred_check_branch
          %149 = sbr.rel (%p147) target = $region20
        $region19: #{tpu_custom_call.1} parent=11 // pred_region
          _
        $region20: #{tpu_custom_call.1} parent=11 // pred_fallthru
          _
      $region12: #{tpu_custom_call.1} parent=5 // pred_fallthru
        _
      %p150 = scmp.lt.s32.totalorder %s12, 2
      // Predicated region
      $region21: #{tpu_custom_call.1} parent=5 // pred_check
        %p151 = pneg %p150
      $region22: #{tpu_custom_call.1} parent=5 // pred_check_branch
        %153 = sbr.rel (%p151) target = $region24
      $region23: #{tpu_custom_call.1} parent=5 // pred_region
        // Predicated region
        $region25: #{tpu_custom_call.1} parent=23 // pred_check
          %p154 = pneg %p44
        $region26: #{tpu_custom_call.1} parent=23 // pred_check_branch
          %156 = sbr.rel (%p154) target = $region28
        $region27: #{tpu_custom_call.1} parent=23 // pred_region
          %p157 = scmp.lt.s32.totalorder %s19, 1
          %s158 = scalar_select %p157, %s19, 1
          %s159 = smul.addr %s158, 8
          %s160 = scalar_lea.vmem %s0, %s159
        $region28: #{tpu_custom_call.1} parent=23 // pred_fallthru
          _
      $region24: #{tpu_custom_call.1} parent=5 // pred_fallthru
        _
      %p161 = scmp.le.s32.totalorder 1, %s12
      %p162 = scmp.lt.s32.totalorder %s12, 3
      %p163 = pnand %p161, %p162
      %p164 = pneg %p163
      // Predicated region
      $region29: #{tpu_custom_call.1} parent=5 // pred_check
        _
      $region30: #{tpu_custom_call.1} parent=5 // pred_check_branch
        %166 = sbr.rel (%p163) target = $region32
      $region31: #{tpu_custom_call.1} parent=5 // pred_region
        %s167 = ssub.s32 %s12, 1
        %p168 = scmp.lt.s32.totalorder %s21, 1
        %s169 = scalar_select %p168, %s21, 1
        %s170 = smul.addr %s169, 8
        %s171 = scalar_lea.vmem %s0, %s170
        %p172 = pneg %p50
        %p173 = pneg %p47
        %p174 = scmp.lt.s32.totalorder %s22, 0
        %s175 = scalar_select %p174, %s22, 0
        %s176 = smul.addr %s175, 8
        %s177 = scalar_lea.vmem %s1, %s176
        %p178 = pneg %p76
        %p179 = pneg %p73
        %p180 = pneg %p97
        %p181 = pneg %p94
        %p182 = pneg %p125
        %p183 = pneg %p122
        %s184 = sand.u32 %s112, 1
        %s185 = scalar_lea.sflag [#allocation3], %s184
        %s186 = sand.u32 %s112, 1
        %s187 = smul.addr %s186, 16
        %s188 = scalar_lea.vmem [#allocation2], %s187
        %p189 = scmp.lt.s32.totalorder %s21, 1
        %s190 = scalar_select %p189, %s21, 1
        %s191 = smul.addr %s190, 8
        %s192 = scalar_lea.vmem %s0, %s191
        %p193 = scmp.lt.s32.totalorder %s22, 0
        %s194 = scalar_select %p193, %s22, 0
        %s195 = smul.addr %s194, 8
        %s196 = scalar_lea.vmem %s1, %s195
        %v197 = vld [vmem:[%s192] sm:$0xff]
        %v198 = vld [vmem:[%s196] sm:$0xff]
        %v199 = vlaneseq
        %v200 = vand.u32 %v199, 127
        %201 = vrot.lane.b32.xlu0 %v198, 1
        %v202 = vpop.permute.xlu0 %201
        %v203 = vsub.s32 %v198, %v202
        %v204 = vadd.s32 %v203, 1
        %v205 = vcvt.s32.f32 %v204
        %v206 = vrcp.pop %v205
        %v207 = vmul.f32 1.0, %v206
        %208 = vset.pattern.permute.xlu0 0
        %209 = vperm.xlu0 %208, %v198
        %v210 = vpop.permute.xlu0 %209
        %vm211 = vcmp.ge.s32.totalorder %v200, %v210
        %212 = vset.pattern.permute.xlu0 1
        %213 = vperm.xlu0 %212, %v198
        %v214 = vpop.permute.xlu0 %213
        %vm215 = vcmp.le.s32.totalorder %v200, %v214
        %vm216 = vmand %vm211, %vm215
        %218 = vset.pattern.permute.xlu0 1
        %219 = vperm.xlu0 %218, %v207
        %v220 = vpop.permute.xlu0 %219
        %v222 = vsel %vm216, %v220, 0.0
        %vm223 = vcmp.eq.s32.totalorder %v200, %v210
        %v224 = vsel %vm223, 1, 0
        %v225 = vcvt.s32.f32 %v224
        %vm226 = vcmp.eq.s32.totalorder %v200, %v214
        %v227 = vsel %vm226, 1, 0
        %v228 = vcvt.s32.f32 %v227
        %vm229 = vcmask 64512
        %v231 = vsel %vm229, %v222, 0
        %v234 = vsel %vm229, %v225, 0
        %v237 = vsel %vm229, %v228, 0
        %239 = vmatprep.subr.mxu0 0.0
        %v240 = vand.u32 %v197, 4294901760
        %241 = vmatpush1.msra.mxu0 %v240
        %242 = vmatprep.subr.mxu0 0.0
        %243 = vmatpush1.msra.mxu0 0.0
        %244 = vmatprep.subr.mxu0 0.0
        %245 = vmatpush1.msra.mxu0 0.0
        %246 = vmatprep.subr.mxu0 0.0
        %247 = vmatpush1.msra.mxu0 0.0
        %248 = vmatprep.subr.mxu0 0.0
        %249 = vmatpush1.msra.mxu0 0.0
        %250 = vmatprep.subr.mxu0 0.0
        %251 = vmatpush1.msra.mxu0 0.0
        %252 = vmatprep.subr.mxu0 0.0
        %253 = vmatpush1.msra.mxu0 0.0
        %254 = vmatprep.subr.mxu0 0.0
        %255 = vmatpush1.msra.mxu0 0.0
        %256 = vmatprep.subr.mxu0 0.0
        %257 = vmatpush1.msra.mxu0 0.0
        %258 = vmatprep.subr.mxu0 0.0
        %259 = vmatpush1.msra.mxu0 0.0
        %260 = vmatprep.subr.mxu0 0.0
        %261 = vmatpush1.msra.mxu0 0.0
        %262 = vmatprep.subr.mxu0 0.0
        %263 = vmatpush1.msra.mxu0 0.0
        %264 = vmatprep.subr.mxu0 0.0
        %265 = vmatpush1.msra.mxu0 0.0
        %266 = vmatprep.subr.mxu0 0.0
        %267 = vmatpush1.msra.mxu0 0.0
        %268 = vmatprep.subr.mxu0 0.0
        %269 = vmatpush1.msra.mxu0 0.0
        %270 = vmatprep.subr.mxu0 0.0
        %271 = vmatpush1.msra.mxu0 0.0
        %272 = vmatprep.subr.mxu0 0.0
        %273 = vmatpush1.msra.mxu0 0.0
        %274 = vmatprep.subr.mxu0 0.0
        %275 = vmatpush1.msra.mxu0 0.0
        %276 = vmatprep.subr.mxu0 0.0
        %277 = vmatpush1.msra.mxu0 0.0
        %278 = vmatprep.subr.mxu0 0.0
        %279 = vmatpush1.msra.mxu0 0.0
        %280 = vmatprep.subr.mxu0 0.0
        %281 = vmatpush1.msra.mxu0 0.0
        %282 = vmatprep.subr.mxu0 0.0
        %283 = vmatpush1.msra.mxu0 0.0
        %284 = vmatprep.subr.mxu0 0.0
        %285 = vmatpush1.msra.mxu0 0.0
        %286 = vmatprep.subr.mxu0 0.0
        %287 = vmatpush1.msra.mxu0 0.0
        %288 = vmatprep.subr.mxu0 0.0
        %289 = vmatpush1.msra.mxu0 0.0
        %290 = vmatprep.subr.mxu0 0.0
        %291 = vmatpush1.msra.mxu0 0.0
        %292 = vmatprep.subr.mxu0 0.0
        %293 = vmatpush1.msra.mxu0 0.0
        %294 = vmatprep.subr.mxu0 0.0
        %295 = vmatpush1.msra.mxu0 0.0
        %296 = vmatprep.subr.mxu0 0.0
        %297 = vmatpush1.msra.mxu0 0.0
        %298 = vmatprep.subr.mxu0 0.0
        %299 = vmatpush1.msra.mxu0 0.0
        %300 = vmatprep.subr.mxu0 0.0
        %301 = vmatpush1.msra.mxu0 0.0
        %302 = vmatprep.subr.mxu0 0.0
        %303 = vmatpush1.msra.mxu0 0.0
        %304 = vmatprep.mubr.f32.mxu0 0.0
        %v305 = vand.u32 %v231, 4294901760
        %v306 = vsub.f32 %v231, %v305
        %v307 = vand.u32 %v306, 4294901760
        %v308 = vsub.f32 %v306, %v307
        %v309 = vand.u32 %v308, 4294901760
        %310 = vmatmul.mubr.f32.gmra.mrb[0].mxu0 %v309
        %v311 = vpop.f32.mrb[0].mxu0
        %v312 = vadd.f32 0.0, %v311
        %v313 = vpop.f32.mrb[0].mxu0
        %314 = vmatprep.mubr.f32.mxu0 0.0
        %v315 = vand.u32 %v234, 4294901760
        %v316 = vsub.f32 %v234, %v315
        %v317 = vand.u32 %v316, 4294901760
        %v318 = vsub.f32 %v316, %v317
        %v319 = vand.u32 %v318, 4294901760
        %320 = vmatmul.mubr.f32.gmra.mrb[0].mxu0 %v319
        %v321 = vpop.f32.mrb[0].mxu0
        %v322 = vadd.f32 0.0, %v321
        %v323 = vpop.f32.mrb[0].mxu0
        %324 = vmatprep.mubr.f32.mxu0 0.0
        %v325 = vand.u32 %v237, 4294901760
        %v326 = vsub.f32 %v237, %v325
        %v327 = vand.u32 %v326, 4294901760
        %v328 = vsub.f32 %v326, %v327
        %v329 = vand.u32 %v328, 4294901760
        %330 = vmatmul.mubr.f32.gmra.mrb[0].mxu0 %v329
        %v331 = vpop.f32.mrb[0].mxu0
        %v332 = vadd.f32 0.0, %v331
        %v333 = vpop.f32.mrb[0].mxu0
        %334 = vdwg.mxu0
        %335 = vmatprep.subr.mxu0 0.0
        %v336 = vand.u32 %v197, 4294901760
        %v337 = vsub.f32 %v197, %v336
        %v338 = vand.u32 %v337, 4294901760
        %v339 = vsub.f32 %v337, %v338
        %v340 = vand.u32 %v339, 4294901760
        %341 = vmatpush1.msra.mxu0 %v340
        %342 = vmatprep.subr.mxu0 0.0
        %343 = vmatpush1.msra.mxu0 0.0
        %344 = vmatprep.subr.mxu0 0.0
        %345 = vmatpush1.msra.mxu0 0.0
        %346 = vmatprep.subr.mxu0 0.0
        %347 = vmatpush1.msra.mxu0 0.0
        %348 = vmatprep.subr.mxu0 0.0
        %349 = vmatpush1.msra.mxu0 0.0
        %350 = vmatprep.subr.mxu0 0.0
        %351 = vmatpush1.msra.mxu0 0.0
        %352 = vmatprep.subr.mxu0 0.0
        %353 = vmatpush1.msra.mxu0 0.0
        %354 = vmatprep.subr.mxu0 0.0
        %355 = vmatpush1.msra.mxu0 0.0
        %356 = vmatprep.subr.mxu0 0.0
        %357 = vmatpush1.msra.mxu0 0.0
        %358 = vmatprep.subr.mxu0 0.0
        %359 = vmatpush1.msra.mxu0 0.0
        %360 = vmatprep.subr.mxu0 0.0
        %361 = vmatpush1.msra.mxu0 0.0
        %362 = vmatprep.subr.mxu0 0.0
        %363 = vmatpush1.msra.mxu0 0.0
        %364 = vmatprep.subr.mxu0 0.0
        %365 = vmatpush1.msra.mxu0 0.0
        %366 = vmatprep.subr.mxu0 0.0
        %367 = vmatpush1.msra.mxu0 0.0
        %368 = vmatprep.subr.mxu0 0.0
        %369 = vmatpush1.msra.mxu0 0.0
        %370 = vmatprep.subr.mxu0 0.0
        %371 = vmatpush1.msra.mxu0 0.0
        %372 = vmatprep.subr.mxu0 0.0
        %373 = vmatpush1.msra.mxu0 0.0
        %374 = vmatprep.subr.mxu0 0.0
        %375 = vmatpush1.msra.mxu0 0.0
        %376 = vmatprep.subr.mxu0 0.0
        %377 = vmatpush1.msra.mxu0 0.0
        %378 = vmatprep.subr.mxu0 0.0
        %379 = vmatpush1.msra.mxu0 0.0
        %380 = vmatprep.subr.mxu0 0.0
        %381 = vmatpush1.msra.mxu0 0.0
        %382 = vmatprep.subr.mxu0 0.0
        %383 = vmatpush1.msra.mxu0 0.0
        %384 = vmatprep.subr.mxu0 0.0
        %385 = vmatpush1.msra.mxu0 0.0
        %386 = vmatprep.subr.mxu0 0.0
        %387 = vmatpush1.msra.mxu0 0.0
        %388 = vmatprep.subr.mxu0 0.0
        %389 = vmatpush1.msra.mxu0 0.0
        %390 = vmatprep.subr.mxu0 0.0
        %391 = vmatpush1.msra.mxu0 0.0
        %392 = vmatprep.subr.mxu0 0.0
        %393 = vmatpush1.msra.mxu0 0.0
        %394 = vmatprep.subr.mxu0 0.0
        %395 = vmatpush1.msra.mxu0 0.0
        %396 = vmatprep.subr.mxu0 0.0
        %397 = vmatpush1.msra.mxu0 0.0
        %398 = vmatprep.subr.mxu0 0.0
        %399 = vmatpush1.msra.mxu0 0.0
        %400 = vmatprep.subr.mxu0 0.0
        %401 = vmatpush1.msra.mxu0 0.0
        %402 = vmatprep.subr.mxu0 0.0
        %403 = vmatpush1.msra.mxu0 0.0
        %404 = vmatprep.mubr.f32.mxu0 0.0
        %v405 = vand.u32 %v231, 4294901760
        %406 = vmatmul.mubr.f32.gmra.mrb[0].mxu0 %v405
        %v407 = vpop.f32.mrb[0].mxu0
        %v408 = vadd.f32 %v312, %v407
        %v409 = vpop.f32.mrb[0].mxu0
        %410 = vmatprep.mubr.f32.mxu0 0.0
        %v411 = vand.u32 %v234, 4294901760
        %412 = vmatmul.mubr.f32.gmra.mrb[0].mxu0 %v411
        %v413 = vpop.f32.mrb[0].mxu0
        %v414 = vadd.f32 %v322, %v413
        %v415 = vpop.f32.mrb[0].mxu0
        %416 = vmatprep.mubr.f32.mxu0 0.0
        %v417 = vand.u32 %v237, 4294901760
        %418 = vmatmul.mubr.f32.gmra.mrb[0].mxu0 %v417
        %v419 = vpop.f32.mrb[0].mxu0
        %v420 = vadd.f32 %v332, %v419
        %v421 = vpop.f32.mrb[0].mxu0
        %422 = vdwg.mxu0
        %423 = vmatprep.subr.mxu0 0.0
        %v424 = vand.u32 %v197, 4294901760
        %v425 = vsub.f32 %v197, %v424
        %426 = vmatpush1.msra.mxu0 %v425
        %427 = vmatprep.subr.mxu0 0.0
        %428 = vmatpush1.msra.mxu0 0.0
        %429 = vmatprep.subr.mxu0 0.0
        %430 = vmatpush1.msra.mxu0 0.0
        %431 = vmatprep.subr.mxu0 0.0
        %432 = vmatpush1.msra.mxu0 0.0
        %433 = vmatprep.subr.mxu0 0.0
        %434 = vmatpush1.msra.mxu0 0.0
        %435 = vmatprep.subr.mxu0 0.0
        %436 = vmatpush1.msra.mxu0 0.0
        %437 = vmatprep.subr.mxu0 0.0
        %438 = vmatpush1.msra.mxu0 0.0
        %439 = vmatprep.subr.mxu0 0.0
        %440 = vmatpush1.msra.mxu0 0.0
        %441 = vmatprep.subr.mxu0 0.0
        %442 = vmatpush1.msra.mxu0 0.0
        %443 = vmatprep.subr.mxu0 0.0
        %444 = vmatpush1.msra.mxu0 0.0
        %445 = vmatprep.subr.mxu0 0.0
        %446 = vmatpush1.msra.mxu0 0.0
        %447 = vmatprep.subr.mxu0 0.0
        %448 = vmatpush1.msra.mxu0 0.0
        %449 = vmatprep.subr.mxu0 0.0
        %450 = vmatpush1.msra.mxu0 0.0
        %451 = vmatprep.subr.mxu0 0.0
        %452 = vmatpush1.msra.mxu0 0.0
        %453 = vmatprep.subr.mxu0 0.0
        %454 = vmatpush1.msra.mxu0 0.0
        %455 = vmatprep.subr.mxu0 0.0
        %456 = vmatpush1.msra.mxu0 0.0
        %457 = vmatprep.subr.mxu0 0.0
        %458 = vmatpush1.msra.mxu0 0.0
        %459 = vmatprep.subr.mxu0 0.0
        %460 = vmatpush1.msra.mxu0 0.0
        %461 = vmatprep.subr.mxu0 0.0
        %462 = vmatpush1.msra.mxu0 0.0
        %463 = vmatprep.subr.mxu0 0.0
        %464 = vmatpush1.msra.mxu0 0.0
        %465 = vmatprep.subr.mxu0 0.0
        %466 = vmatpush1.msra.mxu0 0.0
        %467 = vmatprep.subr.mxu0 0.0
        %468 = vmatpush1.msra.mxu0 0.0
        %469 = vmatprep.subr.mxu0 0.0
        %470 = vmatpush1.msra.mxu0 0.0
        %471 = vmatprep.subr.mxu0 0.0
        %472 = vmatpush1.msra.mxu0 0.0
        %473 = vmatprep.subr.mxu0 0.0
        %474 = vmatpush1.msra.mxu0 0.0
        %475 = vmatprep.subr.mxu0 0.0
        %476 = vmatpush1.msra.mxu0 0.0
        %477 = vmatprep.subr.mxu0 0.0
        %478 = vmatpush1.msra.mxu0 0.0
        %479 = vmatprep.subr.mxu0 0.0
        %480 = vmatpush1.msra.mxu0 0.0
        %481 = vmatprep.subr.mxu0 0.0
        %482 = vmatpush1.msra.mxu0 0.0
        %483 = vmatprep.subr.mxu0 0.0
        %484 = vmatpush1.msra.mxu0 0.0
        %485 = vmatprep.subr.mxu0 0.0
        %486 = vmatpush1.msra.mxu0 0.0
        %487 = vmatprep.subr.mxu0 0.0
        %488 = vmatpush1.msra.mxu0 0.0
        %489 = vmatprep.mubr.f32.mxu0 0.0
        %v490 = vand.u32 %v231, 4294901760
        %v491 = vsub.f32 %v231, %v490
        %492 = vmatmul.mubr.f32.gmra.mrb[0].mxu0 %v491
        %v493 = vpop.f32.mrb[0].mxu0
        %v494 = vadd.f32 %v408, %v493
        %v495 = vpop.f32.mrb[0].mxu0
        %496 = vmatprep.mubr.f32.mxu0 0.0
        %v497 = vand.u32 %v234, 4294901760
        %v498 = vsub.f32 %v234, %v497
        %499 = vmatmul.mubr.f32.gmra.mrb[0].mxu0 %v498
        %v500 = vpop.f32.mrb[0].mxu0
        %v501 = vadd.f32 %v414, %v500
        %v502 = vpop.f32.mrb[0].mxu0
        %503 = vmatprep.mubr.f32.mxu0 0.0
        %v504 = vand.u32 %v237, 4294901760
        %v505 = vsub.f32 %v237, %v504
        %506 = vmatmul.mubr.f32.gmra.mrb[0].mxu0 %v505
        %v507 = vpop.f32.mrb[0].mxu0
        %v508 = vadd.f32 %v420, %v507
        %v509 = vpop.f32.mrb[0].mxu0
        %510 = vdwg.mxu0
        %511 = vmatprep.subr.mxu0 0.0
        %v512 = vand.u32 %v197, 4294901760
        %513 = vmatpush1.msra.mxu0 %v512
        %514 = vmatprep.subr.mxu0 0.0
        %515 = vmatpush1.msra.mxu0 0.0
        %516 = vmatprep.subr.mxu0 0.0
        %517 = vmatpush1.msra.mxu0 0.0
        %518 = vmatprep.subr.mxu0 0.0
        %519 = vmatpush1.msra.mxu0 0.0
        %520 = vmatprep.subr.mxu0 0.0
        %521 = vmatpush1.msra.mxu0 0.0
        %522 = vmatprep.subr.mxu0 0.0
        %523 = vmatpush1.msra.mxu0 0.0
        %524 = vmatprep.subr.mxu0 0.0
        %525 = vmatpush1.msra.mxu0 0.0
        %526 = vmatprep.subr.mxu0 0.0
        %527 = vmatpush1.msra.mxu0 0.0
        %528 = vmatprep.subr.mxu0 0.0
        %529 = vmatpush1.msra.mxu0 0.0
        %530 = vmatprep.subr.mxu0 0.0
        %531 = vmatpush1.msra.mxu0 0.0
        %532 = vmatprep.subr.mxu0 0.0
        %533 = vmatpush1.msra.mxu0 0.0
        %534 = vmatprep.subr.mxu0 0.0
        %535 = vmatpush1.msra.mxu0 0.0
        %536 = vmatprep.subr.mxu0 0.0
        %537 = vmatpush1.msra.mxu0 0.0
        %538 = vmatprep.subr.mxu0 0.0
        %539 = vmatpush1.msra.mxu0 0.0
        %540 = vmatprep.subr.mxu0 0.0
        %541 = vmatpush1.msra.mxu0 0.0
        %542 = vmatprep.subr.mxu0 0.0
        %543 = vmatpush1.msra.mxu0 0.0
        %544 = vmatprep.subr.mxu0 0.0
        %545 = vmatpush1.msra.mxu0 0.0
        %546 = vmatprep.subr.mxu0 0.0
        %547 = vmatpush1.msra.mxu0 0.0
        %548 = vmatprep.subr.mxu0 0.0
        %549 = vmatpush1.msra.mxu0 0.0
        %550 = vmatprep.subr.mxu0 0.0
        %551 = vmatpush1.msra.mxu0 0.0
        %552 = vmatprep.subr.mxu0 0.0
        %553 = vmatpush1.msra.mxu0 0.0
        %554 = vmatprep.subr.mxu0 0.0
        %555 = vmatpush1.msra.mxu0 0.0
        %556 = vmatprep.subr.mxu0 0.0
        %557 = vmatpush1.msra.mxu0 0.0
        %558 = vmatprep.subr.mxu0 0.0
        %559 = vmatpush1.msra.mxu0 0.0
        %560 = vmatprep.subr.mxu0 0.0
        %561 = vmatpush1.msra.mxu0 0.0
        %562 = vmatprep.subr.mxu0 0.0
        %563 = vmatpush1.msra.mxu0 0.0
        %564 = vmatprep.subr.mxu0 0.0
        %565 = vmatpush1.msra.mxu0 0.0
        %566 = vmatprep.subr.mxu0 0.0
        %567 = vmatpush1.msra.mxu0 0.0
        %568 = vmatprep.subr.mxu0 0.0
        %569 = vmatpush1.msra.mxu0 0.0
        %570 = vmatprep.subr.mxu0 0.0
        %571 = vmatpush1.msra.mxu0 0.0
        %572 = vmatprep.subr.mxu0 0.0
        %573 = vmatpush1.msra.mxu0 0.0
        %574 = vmatprep.subr.mxu0 0.0
        %575 = vmatpush1.msra.mxu0 0.0
        %576 = vmatprep.mubr.f32.mxu0 0.0
        %v577 = vand.u32 %v231, 4294901760
        %v578 = vsub.f32 %v231, %v577
        %v579 = vand.u32 %v578, 4294901760
        %580 = vmatmul.mubr.f32.gmra.mrb[0].mxu0 %v579
        %v581 = vpop.f32.mrb[0].mxu0
        %v582 = vadd.f32 %v494, %v581
        %v583 = vpop.f32.mrb[0].mxu0
        %584 = vmatprep.mubr.f32.mxu0 0.0
        %v585 = vand.u32 %v234, 4294901760
        %v586 = vsub.f32 %v234, %v585
        %v587 = vand.u32 %v586, 4294901760
        %588 = vmatmul.mubr.f32.gmra.mrb[0].mxu0 %v587
        %v589 = vpop.f32.mrb[0].mxu0
        %v590 = vadd.f32 %v501, %v589
        %v591 = vpop.f32.mrb[0].mxu0
        %592 = vmatprep.mubr.f32.mxu0 0.0
        %v593 = vand.u32 %v237, 4294901760
        %v594 = vsub.f32 %v237, %v593
        %v595 = vand.u32 %v594, 4294901760
        %596 = vmatmul.mubr.f32.gmra.mrb[0].mxu0 %v595
        %v597 = vpop.f32.mrb[0].mxu0
        %v598 = vadd.f32 %v508, %v597
        %v599 = vpop.f32.mrb[0].mxu0
        %600 = vdwg.mxu0
        %601 = vmatprep.subr.mxu0 0.0
        %v602 = vand.u32 %v197, 4294901760
        %v603 = vsub.f32 %v197, %v602
        %v604 = vand.u32 %v603, 4294901760
        %605 = vmatpush1.msra.mxu0 %v604
        %606 = vmatprep.subr.mxu0 0.0
        %607 = vmatpush1.msra.mxu0 0.0
        %608 = vmatprep.subr.mxu0 0.0
        %609 = vmatpush1.msra.mxu0 0.0
        %610 = vmatprep.subr.mxu0 0.0
        %611 = vmatpush1.msra.mxu0 0.0
        %612 = vmatprep.subr.mxu0 0.0
        %613 = vmatpush1.msra.mxu0 0.0
        %614 = vmatprep.subr.mxu0 0.0
        %615 = vmatpush1.msra.mxu0 0.0
        %616 = vmatprep.subr.mxu0 0.0
        %617 = vmatpush1.msra.mxu0 0.0
        %618 = vmatprep.subr.mxu0 0.0
        %619 = vmatpush1.msra.mxu0 0.0
        %620 = vmatprep.subr.mxu0 0.0
        %621 = vmatpush1.msra.mxu0 0.0
        %622 = vmatprep.subr.mxu0 0.0
        %623 = vmatpush1.msra.mxu0 0.0
        %624 = vmatprep.subr.mxu0 0.0
        %625 = vmatpush1.msra.mxu0 0.0
        %626 = vmatprep.subr.mxu0 0.0
        %627 = vmatpush1.msra.mxu0 0.0
        %628 = vmatprep.subr.mxu0 0.0
        %629 = vmatpush1.msra.mxu0 0.0
        %630 = vmatprep.subr.mxu0 0.0
        %631 = vmatpush1.msra.mxu0 0.0
        %632 = vmatprep.subr.mxu0 0.0
        %633 = vmatpush1.msra.mxu0 0.0
        %634 = vmatprep.subr.mxu0 0.0
        %635 = vmatpush1.msra.mxu0 0.0
        %636 = vmatprep.subr.mxu0 0.0
        %637 = vmatpush1.msra.mxu0 0.0
        %638 = vmatprep.subr.mxu0 0.0
        %639 = vmatpush1.msra.mxu0 0.0
        %640 = vmatprep.subr.mxu0 0.0
        %641 = vmatpush1.msra.mxu0 0.0
        %642 = vmatprep.subr.mxu0 0.0
        %643 = vmatpush1.msra.mxu0 0.0
        %644 = vmatprep.subr.mxu0 0.0
        %645 = vmatpush1.msra.mxu0 0.0
        %646 = vmatprep.subr.mxu0 0.0
        %647 = vmatpush1.msra.mxu0 0.0
        %648 = vmatprep.subr.mxu0 0.0
        %649 = vmatpush1.msra.mxu0 0.0
        %650 = vmatprep.subr.mxu0 0.0
        %651 = vmatpush1.msra.mxu0 0.0
        %652 = vmatprep.subr.mxu0 0.0
        %653 = vmatpush1.msra.mxu0 0.0
        %654 = vmatprep.subr.mxu0 0.0
        %655 = vmatpush1.msra.mxu0 0.0
        %656 = vmatprep.subr.mxu0 0.0
        %657 = vmatpush1.msra.mxu0 0.0
        %658 = vmatprep.subr.mxu0 0.0
        %659 = vmatpush1.msra.mxu0 0.0
        %660 = vmatprep.subr.mxu0 0.0
        %661 = vmatpush1.msra.mxu0 0.0
        %662 = vmatprep.subr.mxu0 0.0
        %663 = vmatpush1.msra.mxu0 0.0
        %664 = vmatprep.subr.mxu0 0.0
        %665 = vmatpush1.msra.mxu0 0.0
        %666 = vmatprep.subr.mxu0 0.0
        %667 = vmatpush1.msra.mxu0 0.0
        %668 = vmatprep.mubr.f32.mxu0 0.0
        %v669 = vand.u32 %v231, 4294901760
        %670 = vmatmul.mubr.f32.gmra.mrb[0].mxu0 %v669
        %v671 = vpop.f32.mrb[0].mxu0
        %v672 = vadd.f32 %v582, %v671
        %v673 = vpop.f32.mrb[0].mxu0
        %674 = vmatprep.mubr.f32.mxu0 0.0
        %v675 = vand.u32 %v234, 4294901760
        %676 = vmatmul.mubr.f32.gmra.mrb[0].mxu0 %v675
        %v677 = vpop.f32.mrb[0].mxu0
        %v678 = vadd.f32 %v590, %v677
        %v679 = vpop.f32.mrb[0].mxu0
        %680 = vmatprep.mubr.f32.mxu0 0.0
        %v681 = vand.u32 %v237, 4294901760
        %682 = vmatmul.mubr.f32.gmra.mrb[0].mxu0 %v681
        %v683 = vpop.f32.mrb[0].mxu0
        %v684 = vadd.f32 %v598, %v683
        %v685 = vpop.f32.mrb[0].mxu0
        %686 = vdwg.mxu0
        %687 = vmatprep.subr.mxu0 0.0
        %v688 = vand.u32 %v197, 4294901760
        %689 = vmatpush1.msra.mxu0 %v688
        %690 = vmatprep.subr.mxu0 0.0
        %691 = vmatpush1.msra.mxu0 0.0
        %692 = vmatprep.subr.mxu0 0.0
        %693 = vmatpush1.msra.mxu0 0.0
        %694 = vmatprep.subr.mxu0 0.0
        %695 = vmatpush1.msra.mxu0 0.0
        %696 = vmatprep.subr.mxu0 0.0
        %697 = vmatpush1.msra.mxu0 0.0
        %698 = vmatprep.subr.mxu0 0.0
        %699 = vmatpush1.msra.mxu0 0.0
        %700 = vmatprep.subr.mxu0 0.0
        %701 = vmatpush1.msra.mxu0 0.0
        %702 = vmatprep.subr.mxu0 0.0
        %703 = vmatpush1.msra.mxu0 0.0
        %704 = vmatprep.subr.mxu0 0.0
        %705 = vmatpush1.msra.mxu0 0.0
        %706 = vmatprep.subr.mxu0 0.0
        %707 = vmatpush1.msra.mxu0 0.0
        %708 = vmatprep.subr.mxu0 0.0
        %709 = vmatpush1.msra.mxu0 0.0
        %710 = vmatprep.subr.mxu0 0.0
        %711 = vmatpush1.msra.mxu0 0.0
        %712 = vmatprep.subr.mxu0 0.0
        %713 = vmatpush1.msra.mxu0 0.0
        %714 = vmatprep.subr.mxu0 0.0
        %715 = vmatpush1.msra.mxu0 0.0
        %716 = vmatprep.subr.mxu0 0.0
        %717 = vmatpush1.msra.mxu0 0.0
        %718 = vmatprep.subr.mxu0 0.0
        %719 = vmatpush1.msra.mxu0 0.0
        %720 = vmatprep.subr.mxu0 0.0
        %721 = vmatpush1.msra.mxu0 0.0
        %722 = vmatprep.subr.mxu0 0.0
        %723 = vmatpush1.msra.mxu0 0.0
        %724 = vmatprep.subr.mxu0 0.0
        %725 = vmatpush1.msra.mxu0 0.0
        %726 = vmatprep.subr.mxu0 0.0
        %727 = vmatpush1.msra.mxu0 0.0
        %728 = vmatprep.subr.mxu0 0.0
        %729 = vmatpush1.msra.mxu0 0.0
        %730 = vmatprep.subr.mxu0 0.0
        %731 = vmatpush1.msra.mxu0 0.0
        %732 = vmatprep.subr.mxu0 0.0
        %733 = vmatpush1.msra.mxu0 0.0
        %734 = vmatprep.subr.mxu0 0.0
        %735 = vmatpush1.msra.mxu0 0.0
        %736 = vmatprep.subr.mxu0 0.0
        %737 = vmatpush1.msra.mxu0 0.0
        %738 = vmatprep.subr.mxu0 0.0
        %739 = vmatpush1.msra.mxu0 0.0
        %740 = vmatprep.subr.mxu0 0.0
        %741 = vmatpush1.msra.mxu0 0.0
        %742 = vmatprep.subr.mxu0 0.0
        %743 = vmatpush1.msra.mxu0 0.0
        %744 = vmatprep.subr.mxu0 0.0
        %745 = vmatpush1.msra.mxu0 0.0
        %746 = vmatprep.subr.mxu0 0.0
        %747 = vmatpush1.msra.mxu0 0.0
        %748 = vmatprep.subr.mxu0 0.0
        %749 = vmatpush1.msra.mxu0 0.0
        %750 = vmatprep.subr.mxu0 0.0
        %751 = vmatpush1.msra.mxu0 0.0
        %752 = vmatprep.mubr.f32.mxu0 0.0
        %v753 = vand.u32 %v231, 4294901760
        %754 = vmatmul.mubr.f32.gmra.mrb[0].mxu0 %v753
        %v755 = vpop.f32.mrb[0].mxu0
        %v756 = vadd.f32 %v672, %v755
        %v757 = vpop.f32.mrb[0].mxu0
        %758 = vmatprep.mubr.f32.mxu0 0.0
        %v759 = vand.u32 %v234, 4294901760
        %760 = vmatmul.mubr.f32.gmra.mrb[0].mxu0 %v759
        %v761 = vpop.f32.mrb[0].mxu0
        %v762 = vadd.f32 %v678, %v761
        %v763 = vpop.f32.mrb[0].mxu0
        %764 = vmatprep.mubr.f32.mxu0 0.0
        %v765 = vand.u32 %v237, 4294901760
        %766 = vmatmul.mubr.f32.gmra.mrb[0].mxu0 %v765
        %v767 = vpop.f32.mrb[0].mxu0
        %v768 = vadd.f32 %v684, %v767
        %v769 = vpop.f32.mrb[0].mxu0
        %770 = vdwg.mxu0
        %771 = vset.pattern.permute.xlu0 3
        %772 = vperm.xlu0 %771, %v198
        %v773 = vpop.permute.xlu0 %772
        %vm774 = vcmp.eq.s32.totalorder %v200, %v773
        %v775 = vadd.s32 %v198, 32
        %776 = vset.pattern.permute.xlu0 4
        %777 = vperm.xlu0 %776, %v775
        %v778 = vpop.permute.xlu0 %777
        %vm779 = vcmp.eq.s32.totalorder %v200, %v778
        %vm780 = vmor %vm774, %vm779
        %v781 = vadd.s32 %v198, 64
        %782 = vset.pattern.permute.xlu0 2
        %783 = vperm.xlu0 %782, %v781
        %v784 = vpop.permute.xlu0 %783
        %vm785 = vcmp.eq.s32.totalorder %v200, %v784
        %vm786 = vmor %vm780, %vm785
        %v787 = vsel %vm786, 1, 0
        %v788 = vcvt.s32.f32 %v787
        %v789 = vld [vmem:[%s2] sm:$0xff]
        %v790 = vld [vmem:[%s2 + $0x8] sm:$0xff]
        %v791 = vld [vmem:[%s2 + $0x10] sm:$0xff]
        %v792 = vld [vmem:[%s2 + $0x18] sm:$0xff]
        %v793 = vld [vmem:[%s2 + $0x20] sm:$0xff]
        %v794 = vld [vmem:[%s2 + $0x28] sm:$0xff]
        %v795 = vld [vmem:[%s2 + $0x30] sm:$0xff]
        %v796 = vld [vmem:[%s2 + $0x38] sm:$0xff]
        %v797 = vld [vmem:[%s2 + $0x40] sm:$0xff]
        %v798 = vld [vmem:[%s2 + $0x48] sm:$0xff]
        %vm799 = vcmask 654336
        %v801 = vsel %vm799, %v788, 0
        %803 = vmatprep.subr.mxu0 0.0
        %v804 = vand.u32 %v789, 4294901760
        %805 = vmatpush1.msra.mxu0 %v804
        %806 = vmatprep.subr.mxu0 0.0
        %v807 = vand.u32 %v790, 4294901760
        %808 = vmatpush1.msra.mxu0 %v807
        %809 = vmatprep.subr.mxu0 0.0
        %v810 = vand.u32 %v791, 4294901760
        %811 = vmatpush1.msra.mxu0 %v810
        %812 = vmatprep.subr.mxu0 0.0
        %v813 = vand.u32 %v792, 4294901760
        %814 = vmatpush1.msra.mxu0 %v813
        %815 = vmatprep.subr.mxu0 0.0
        %v816 = vand.u32 %v793, 4294901760
        %817 = vmatpush1.msra.mxu0 %v816
        %818 = vmatprep.subr.mxu0 0.0
        %v819 = vand.u32 %v794, 4294901760
        %820 = vmatpush1.msra.mxu0 %v819
        %821 = vmatprep.subr.mxu0 0.0
        %v822 = vand.u32 %v795, 4294901760
        %823 = vmatpush1.msra.mxu0 %v822
        %824 = vmatprep.subr.mxu0 0.0
        %v825 = vand.u32 %v796, 4294901760
        %826 = vmatpush1.msra.mxu0 %v825
        %827 = vmatprep.subr.mxu0 0.0
        %v828 = vand.u32 %v797, 4294901760
        %829 = vmatpush1.msra.mxu0 %v828
        %830 = vmatprep.subr.mxu0 0.0
        %v831 = vand.u32 %v798, 4294901760
        %832 = vmatpush1.msra.mxu0 %v831
        %833 = vmatprep.subr.mxu0 0.0
        %834 = vmatpush1.msra.mxu0 0.0
        %835 = vmatprep.subr.mxu0 0.0
        %836 = vmatpush1.msra.mxu0 0.0
        %837 = vmatprep.subr.mxu0 0.0
        %838 = vmatpush1.msra.mxu0 0.0
        %839 = vmatprep.subr.mxu0 0.0
        %840 = vmatpush1.msra.mxu0 0.0
        %841 = vmatprep.subr.mxu0 0.0
        %842 = vmatpush1.msra.mxu0 0.0
        %843 = vmatprep.subr.mxu0 0.0
        %844 = vmatpush1.msra.mxu0 0.0
        %845 = vmatprep.subr.mxu0 0.0
        %846 = vmatpush1.msra.mxu0 0.0
        %847 = vmatprep.subr.mxu0 0.0
        %848 = vmatpush1.msra.mxu0 0.0
        %849 = vmatprep.subr.mxu0 0.0
        %850 = vmatpush1.msra.mxu0 0.0
        %851 = vmatprep.subr.mxu0 0.0
        %852 = vmatpush1.msra.mxu0 0.0
        %853 = vmatprep.subr.mxu0 0.0
        %854 = vmatpush1.msra.mxu0 0.0
        %855 = vmatprep.subr.mxu0 0.0
        %856 = vmatpush1.msra.mxu0 0.0
        %857 = vmatprep.subr.mxu0 0.0
        %858 = vmatpush1.msra.mxu0 0.0
        %859 = vmatprep.subr.mxu0 0.0
        %860 = vmatpush1.msra.mxu0 0.0
        %861 = vmatprep.subr.mxu0 0.0
        %862 = vmatpush1.msra.mxu0 0.0
        %863 = vmatprep.subr.mxu0 0.0
        %864 = vmatpush1.msra.mxu0 0.0
        %865 = vmatprep.subr.mxu0 0.0
        %866 = vmatpush1.msra.mxu0 0.0
        %867 = vmatprep.subr.mxu0 0.0
        %868 = vmatpush1.msra.mxu0 0.0
        %869 = vmatprep.subr.mxu0 0.0
        %870 = vmatpush1.msra.mxu0 0.0
        %871 = vmatprep.subr.mxu0 0.0
        %872 = vmatpush1.msra.mxu0 0.0
        %873 = vmatprep.subr.mxu0 0.0
        %874 = vmatpush1.msra.mxu0 0.0
        %875 = vmatprep.subr.mxu0 0.0
        %876 = vmatpush1.msra.mxu0 0.0
        %877 = vmatprep.mubr.f32.mxu0 0.0
        %v878 = vand.u32 %v801, 4294901760
        %v879 = vsub.f32 %v801, %v878
        %v880 = vand.u32 %v879, 4294901760
        %v881 = vsub.f32 %v879, %v880
        %v882 = vand.u32 %v881, 4294901760
        %883 = vmatmul.mubr.f32.gmra.mrb[0].mxu0 %v882
        %v884 = vpop.f32.mrb[0].mxu0
        %v885 = vadd.f32 0.0, %v884
        %v886 = vpop.f32.mrb[0].mxu0
        %887 = vdwg.mxu0
        %888 = vmatprep.subr.mxu0 0.0
        %v889 = vand.u32 %v789, 4294901760
        %v890 = vsub.f32 %v789, %v889
        %v891 = vand.u32 %v890, 4294901760
        %v892 = vsub.f32 %v890, %v891
        %v893 = vand.u32 %v892, 4294901760
        %894 = vmatpush1.msra.mxu0 %v893
        %895 = vmatprep.subr.mxu0 0.0
        %v896 = vand.u32 %v790, 4294901760
        %v897 = vsub.f32 %v790, %v896
        %v898 = vand.u32 %v897, 4294901760
        %v899 = vsub.f32 %v897, %v898
        %v900 = vand.u32 %v899, 4294901760
        %901 = vmatpush1.msra.mxu0 %v900
        %902 = vmatprep.subr.mxu0 0.0
        %v903 = vand.u32 %v791, 4294901760
        %v904 = vsub.f32 %v791, %v903
        %v905 = vand.u32 %v904, 4294901760
        %v906 = vsub.f32 %v904, %v905
        %v907 = vand.u32 %v906, 4294901760
        %908 = vmatpush1.msra.mxu0 %v907
        %909 = vmatprep.subr.mxu0 0.0
        %v910 = vand.u32 %v792, 4294901760
        %v911 = vsub.f32 %v792, %v910
        %v912 = vand.u32 %v911, 4294901760
        %v913 = vsub.f32 %v911, %v912
        %v914 = vand.u32 %v913, 4294901760
        %915 = vmatpush1.msra.mxu0 %v914
        %916 = vmatprep.subr.mxu0 0.0
        %v917 = vand.u32 %v793, 4294901760
        %v918 = vsub.f32 %v793, %v917
        %v919 = vand.u32 %v918, 4294901760
        %v920 = vsub.f32 %v918, %v919
        %v921 = vand.u32 %v920, 4294901760
        %922 = vmatpush1.msra.mxu0 %v921
        %923 = vmatprep.subr.mxu0 0.0
        %v924 = vand.u32 %v794, 4294901760
        %v925 = vsub.f32 %v794, %v924
        %v926 = vand.u32 %v925, 4294901760
        %v927 = vsub.f32 %v925, %v926
        %v928 = vand.u32 %v927, 4294901760
        %929 = vmatpush1.msra.mxu0 %v928
        %930 = vmatprep.subr.mxu0 0.0
        %v931 = vand.u32 %v795, 4294901760
        %v932 = vsub.f32 %v795, %v931
        %v933 = vand.u32 %v932, 4294901760
        %v934 = vsub.f32 %v932, %v933
        %v935 = vand.u32 %v934, 4294901760
        %936 = vmatpush1.msra.mxu0 %v935
        %937 = vmatprep.subr.mxu0 0.0
        %v938 = vand.u32 %v796, 4294901760
        %v939 = vsub.f32 %v796, %v938
        %v940 = vand.u32 %v939, 4294901760
        %v941 = vsub.f32 %v939, %v940
        %v942 = vand.u32 %v941, 4294901760
        %943 = vmatpush1.msra.mxu0 %v942
        %944 = vmatprep.subr.mxu0 0.0
        %v945 = vand.u32 %v797, 4294901760
        %v946 = vsub.f32 %v797, %v945
        %v947 = vand.u32 %v946, 4294901760
        %v948 = vsub.f32 %v946, %v947
        %v949 = vand.u32 %v948, 4294901760
        %950 = vmatpush1.msra.mxu0 %v949
        %951 = vmatprep.subr.mxu0 0.0
        %v952 = vand.u32 %v798, 4294901760
        %v953 = vsub.f32 %v798, %v952
        %v954 = vand.u32 %v953, 4294901760
        %v955 = vsub.f32 %v953, %v954
        %v956 = vand.u32 %v955, 4294901760
        %957 = vmatpush1.msra.mxu0 %v956
        %958 = vmatprep.subr.mxu0 0.0
        %959 = vmatpush1.msra.mxu0 0.0
        %960 = vmatprep.subr.mxu0 0.0
        %961 = vmatpush1.msra.mxu0 0.0
        %962 = vmatprep.subr.mxu0 0.0
        %963 = vmatpush1.msra.mxu0 0.0
        %964 = vmatprep.subr.mxu0 0.0
        %965 = vmatpush1.msra.mxu0 0.0
        %966 = vmatprep.subr.mxu0 0.0
        %967 = vmatpush1.msra.mxu0 0.0
        %968 = vmatprep.subr.mxu0 0.0
        %969 = vmatpush1.msra.mxu0 0.0
        %970 = vmatprep.subr.mxu0 0.0
        %971 = vmatpush1.msra.mxu0 0.0
        %972 = vmatprep.subr.mxu0 0.0
        %973 = vmatpush1.msra.mxu0 0.0
        %974 = vmatprep.subr.mxu0 0.0
        %975 = vmatpush1.msra.mxu0 0.0
        %976 = vmatprep.subr.mxu0 0.0
        %977 = vmatpush1.msra.mxu0 0.0
        %978 = vmatprep.subr.mxu0 0.0
        %979 = vmatpush1.msra.mxu0 0.0
        %980 = vmatprep.subr.mxu0 0.0
        %981 = vmatpush1.msra.mxu0 0.0
        %982 = vmatprep.subr.mxu0 0.0
        %983 = vmatpush1.msra.mxu0 0.0
        %984 = vmatprep.subr.mxu0 0.0
        %985 = vmatpush1.msra.mxu0 0.0
        %986 = vmatprep.subr.mxu0 0.0
        %987 = vmatpush1.msra.mxu0 0.0
        %988 = vmatprep.subr.mxu0 0.0
        %989 = vmatpush1.msra.mxu0 0.0
        %990 = vmatprep.subr.mxu0 0.0
        %991 = vmatpush1.msra.mxu0 0.0
        %992 = vmatprep.subr.mxu0 0.0
        %993 = vmatpush1.msra.mxu0 0.0
        %994 = vmatprep.subr.mxu0 0.0
        %995 = vmatpush1.msra.mxu0 0.0
        %996 = vmatprep.subr.mxu0 0.0
        %997 = vmatpush1.msra.mxu0 0.0
        %998 = vmatprep.subr.mxu0 0.0
        %999 = vmatpush1.msra.mxu0 0.0
        %1000 = vmatprep.subr.mxu0 0.0
        %1001 = vmatpush1.msra.mxu0 0.0
        %1002 = vmatprep.mubr.f32.mxu0 0.0
        %v1003 = vand.u32 %v801, 4294901760
        %1004 = vmatmul.mubr.f32.gmra.mrb[0].mxu0 %v1003
        %v1005 = vpop.f32.mrb[0].mxu0
        %v1006 = vadd.f32 %v885, %v1005
        %v1007 = vpop.f32.mrb[0].mxu0
        %1008 = vdwg.mxu0
        %1009 = vmatprep.subr.mxu0 0.0
        %v1010 = vand.u32 %v789, 4294901760
        %v1011 = vsub.f32 %v789, %v1010
        %1012 = vmatpush1.msra.mxu0 %v1011
        %1013 = vmatprep.subr.mxu0 0.0
        %v1014 = vand.u32 %v790, 4294901760
        %v1015 = vsub.f32 %v790, %v1014
        %1016 = vmatpush1.msra.mxu0 %v1015
        %1017 = vmatprep.subr.mxu0 0.0
        %v1018 = vand.u32 %v791, 4294901760
        %v1019 = vsub.f32 %v791, %v1018
        %1020 = vmatpush1.msra.mxu0 %v1019
        %1021 = vmatprep.subr.mxu0 0.0
        %v1022 = vand.u32 %v792, 4294901760
        %v1023 = vsub.f32 %v792, %v1022
        %1024 = vmatpush1.msra.mxu0 %v1023
        %1025 = vmatprep.subr.mxu0 0.0
        %v1026 = vand.u32 %v793, 4294901760
        %v1027 = vsub.f32 %v793, %v1026
        %1028 = vmatpush1.msra.mxu0 %v1027
        %1029 = vmatprep.subr.mxu0 0.0
        %v1030 = vand.u32 %v794, 4294901760
        %v1031 = vsub.f32 %v794, %v1030
        %1032 = vmatpush1.msra.mxu0 %v1031
        %1033 = vmatprep.subr.mxu0 0.0
        %v1034 = vand.u32 %v795, 4294901760
        %v1035 = vsub.f32 %v795, %v1034
        %1036 = vmatpush1.msra.mxu0 %v1035
        %1037 = vmatprep.subr.mxu0 0.0
        %v1038 = vand.u32 %v796, 4294901760
        %v1039 = vsub.f32 %v796, %v1038
        %1040 = vmatpush1.msra.mxu0 %v1039
        %1041 = vmatprep.subr.mxu0 0.0
        %v1042 = vand.u32 %v797, 4294901760
        %v1043 = vsub.f32 %v797, %v1042
        %1044 = vmatpush1.msra.mxu0 %v1043
        %1045 = vmatprep.subr.mxu0 0.0
        %v1046 = vand.u32 %v798, 4294901760
        %v1047 = vsub.f32 %v798, %v1046
        %1048 = vmatpush1.msra.mxu0 %v1047
        %1049 = vmatprep.subr.mxu0 0.0
        %1050 = vmatpush1.msra.mxu0 0.0
        %1051 = vmatprep.subr.mxu0 0.0
        %1052 = vmatpush1.msra.mxu0 0.0
        %1053 = vmatprep.subr.mxu0 0.0
        %1054 = vmatpush1.msra.mxu0 0.0
        %1055 = vmatprep.subr.mxu0 0.0
        %1056 = vmatpush1.msra.mxu0 0.0
        %1057 = vmatprep.subr.mxu0 0.0
        %1058 = vmatpush1.msra.mxu0 0.0
        %1059 = vmatprep.subr.mxu0 0.0
        %1060 = vmatpush1.msra.mxu0 0.0
        %1061 = vmatprep.subr.mxu0 0.0
        %1062 = vmatpush1.msra.mxu0 0.0
        %1063 = vmatprep.subr.mxu0 0.0
        %1064 = vmatpush1.msra.mxu0 0.0
        %1065 = vmatprep.subr.mxu0 0.0
        %1066 = vmatpush1.msra.mxu0 0.0
        %1067 = vmatprep.subr.mxu0 0.0
        %1068 = vmatpush1.msra.mxu0 0.0
        %1069 = vmatprep.subr.mxu0 0.0
        %1070 = vmatpush1.msra.mxu0 0.0
        %1071 = vmatprep.subr.mxu0 0.0
        %1072 = vmatpush1.msra.mxu0 0.0
        %1073 = vmatprep.subr.mxu0 0.0
        %1074 = vmatpush1.msra.mxu0 0.0
        %1075 = vmatprep.subr.mxu0 0.0
        %1076 = vmatpush1.msra.mxu0 0.0
        %1077 = vmatprep.subr.mxu0 0.0
        %1078 = vmatpush1.msra.mxu0 0.0
        %1079 = vmatprep.subr.mxu0 0.0
        %1080 = vmatpush1.msra.mxu0 0.0
        %1081 = vmatprep.subr.mxu0 0.0
        %1082 = vmatpush1.msra.mxu0 0.0
        %1083 = vmatprep.subr.mxu0 0.0
        %1084 = vmatpush1.msra.mxu0 0.0
        %1085 = vmatprep.subr.mxu0 0.0
        %1086 = vmatpush1.msra.mxu0 0.0
        %1087 = vmatprep.subr.mxu0 0.0
        %1088 = vmatpush1.msra.mxu0 0.0
        %1089 = vmatprep.subr.mxu0 0.0
        %1090 = vmatpush1.msra.mxu0 0.0
        %1091 = vmatprep.subr.mxu0 0.0
        %1092 = vmatpush1.msra.mxu0 0.0
        %1093 = vmatprep.mubr.f32.mxu0 0.0
        %v1094 = vand.u32 %v801, 4294901760
        %v1095 = vsub.f32 %v801, %v1094
        %1096 = vmatmul.mubr.f32.gmra.mrb[0].mxu0 %v1095
        %v1097 = vpop.f32.mrb[0].mxu0
        %v1098 = vadd.f32 %v1006, %v1097
        %v1099 = vpop.f32.mrb[0].mxu0
        %1100 = vdwg.mxu0
        %1101 = vmatprep.subr.mxu0 0.0
        %v1102 = vand.u32 %v789, 4294901760
        %1103 = vmatpush1.msra.mxu0 %v1102
        %1104 = vmatprep.subr.mxu0 0.0
        %v1105 = vand.u32 %v790, 4294901760
        %1106 = vmatpush1.msra.mxu0 %v1105
        %1107 = vmatprep.subr.mxu0 0.0
        %v1108 = vand.u32 %v791, 4294901760
        %1109 = vmatpush1.msra.mxu0 %v1108
        %1110 = vmatprep.subr.mxu0 0.0
        %v1111 = vand.u32 %v792, 4294901760
        %1112 = vmatpush1.msra.mxu0 %v1111
        %1113 = vmatprep.subr.mxu0 0.0
        %v1114 = vand.u32 %v793, 4294901760
        %1115 = vmatpush1.msra.mxu0 %v1114
        %1116 = vmatprep.subr.mxu0 0.0
        %v1117 = vand.u32 %v794, 4294901760
        %1118 = vmatpush1.msra.mxu0 %v1117
        %1119 = vmatprep.subr.mxu0 0.0
        %v1120 = vand.u32 %v795, 4294901760
        %1121 = vmatpush1.msra.mxu0 %v1120
        %1122 = vmatprep.subr.mxu0 0.0
        %v1123 = vand.u32 %v796, 4294901760
        %1124 = vmatpush1.msra.mxu0 %v1123
        %1125 = vmatprep.subr.mxu0 0.0
        %v1126 = vand.u32 %v797, 4294901760
        %1127 = vmatpush1.msra.mxu0 %v1126
        %1128 = vmatprep.subr.mxu0 0.0
        %v1129 = vand.u32 %v798, 4294901760
        %1130 = vmatpush1.msra.mxu0 %v1129
        %1131 = vmatprep.subr.mxu0 0.0
        %1132 = vmatpush1.msra.mxu0 0.0
        %1133 = vmatprep.subr.mxu0 0.0
        %1134 = vmatpush1.msra.mxu0 0.0
        %1135 = vmatprep.subr.mxu0 0.0
        %1136 = vmatpush1.msra.mxu0 0.0
        %1137 = vmatprep.subr.mxu0 0.0
        %1138 = vmatpush1.msra.mxu0 0.0
        %1139 = vmatprep.subr.mxu0 0.0
        %1140 = vmatpush1.msra.mxu0 0.0
        %1141 = vmatprep.subr.mxu0 0.0
        %1142 = vmatpush1.msra.mxu0 0.0
        %1143 = vmatprep.subr.mxu0 0.0
        %1144 = vmatpush1.msra.mxu0 0.0
        %1145 = vmatprep.subr.mxu0 0.0
        %1146 = vmatpush1.msra.mxu0 0.0
        %1147 = vmatprep.subr.mxu0 0.0
        %1148 = vmatpush1.msra.mxu0 0.0
        %1149 = vmatprep.subr.mxu0 0.0
        %1150 = vmatpush1.msra.mxu0 0.0
        %1151 = vmatprep.subr.mxu0 0.0
        %1152 = vmatpush1.msra.mxu0 0.0
        %1153 = vmatprep.subr.mxu0 0.0
        %1154 = vmatpush1.msra.mxu0 0.0
        %1155 = vmatprep.subr.mxu0 0.0
        %1156 = vmatpush1.msra.mxu0 0.0
        %1157 = vmatprep.subr.mxu0 0.0
        %1158 = vmatpush1.msra.mxu0 0.0
        %1159 = vmatprep.subr.mxu0 0.0
        %1160 = vmatpush1.msra.mxu0 0.0
        %1161 = vmatprep.subr.mxu0 0.0
        %1162 = vmatpush1.msra.mxu0 0.0
        %1163 = vmatprep.subr.mxu0 0.0
        %1164 = vmatpush1.msra.mxu0 0.0
        %1165 = vmatprep.subr.mxu0 0.0
        %1166 = vmatpush1.msra.mxu0 0.0
        %1167 = vmatprep.subr.mxu0 0.0
        %1168 = vmatpush1.msra.mxu0 0.0
        %1169 = vmatprep.subr.mxu0 0.0
        %1170 = vmatpush1.msra.mxu0 0.0
        %1171 = vmatprep.subr.mxu0 0.0
        %1172 = vmatpush1.msra.mxu0 0.0
        %1173 = vmatprep.subr.mxu0 0.0
        %1174 = vmatpush1.msra.mxu0 0.0
        %1175 = vmatprep.mubr.f32.mxu0 0.0
        %v1176 = vand.u32 %v801, 4294901760
        %v1177 = vsub.f32 %v801, %v1176
        %v1178 = vand.u32 %v1177, 4294901760
        %1179 = vmatmul.mubr.f32.gmra.mrb[0].mxu0 %v1178
        %v1180 = vpop.f32.mrb[0].mxu0
        %v1181 = vadd.f32 %v1098, %v1180
        %v1182 = vpop.f32.mrb[0].mxu0
        %1183 = vdwg.mxu0
        %1184 = vmatprep.subr.mxu0 0.0
        %v1185 = vand.u32 %v789, 4294901760
        %v1186 = vsub.f32 %v789, %v1185
        %v1187 = vand.u32 %v1186, 4294901760
        %1188 = vmatpush1.msra.mxu0 %v1187
        %1189 = vmatprep.subr.mxu0 0.0
        %v1190 = vand.u32 %v790, 4294901760
        %v1191 = vsub.f32 %v790, %v1190
        %v1192 = vand.u32 %v1191, 4294901760
        %1193 = vmatpush1.msra.mxu0 %v1192
        %1194 = vmatprep.subr.mxu0 0.0
        %v1195 = vand.u32 %v791, 4294901760
        %v1196 = vsub.f32 %v791, %v1195
        %v1197 = vand.u32 %v1196, 4294901760
        %1198 = vmatpush1.msra.mxu0 %v1197
        %1199 = vmatprep.subr.mxu0 0.0
        %v1200 = vand.u32 %v792, 4294901760
        %v1201 = vsub.f32 %v792, %v1200
        %v1202 = vand.u32 %v1201, 4294901760
        %1203 = vmatpush1.msra.mxu0 %v1202
        %1204 = vmatprep.subr.mxu0 0.0
        %v1205 = vand.u32 %v793, 4294901760
        %v1206 = vsub.f32 %v793, %v1205
        %v1207 = vand.u32 %v1206, 4294901760
        %1208 = vmatpush1.msra.mxu0 %v1207
        %1209 = vmatprep.subr.mxu0 0.0
        %v1210 = vand.u32 %v794, 4294901760
        %v1211 = vsub.f32 %v794, %v1210
        %v1212 = vand.u32 %v1211, 4294901760
        %1213 = vmatpush1.msra.mxu0 %v1212
        %1214 = vmatprep.subr.mxu0 0.0
        %v1215 = vand.u32 %v795, 4294901760
        %v1216 = vsub.f32 %v795, %v1215
        %v1217 = vand.u32 %v1216, 4294901760
        %1218 = vmatpush1.msra.mxu0 %v1217
        %1219 = vmatprep.subr.mxu0 0.0
        %v1220 = vand.u32 %v796, 4294901760
        %v1221 = vsub.f32 %v796, %v1220
        %v1222 = vand.u32 %v1221, 4294901760
        %1223 = vmatpush1.msra.mxu0 %v1222
        %1224 = vmatprep.subr.mxu0 0.0
        %v1225 = vand.u32 %v797, 4294901760
        %v1226 = vsub.f32 %v797, %v1225
        %v1227 = vand.u32 %v1226, 4294901760
        %1228 = vmatpush1.msra.mxu0 %v1227
        %1229 = vmatprep.subr.mxu0 0.0
        %v1230 = vand.u32 %v798, 4294901760
        %v1231 = vsub.f32 %v798, %v1230
        %v1232 = vand.u32 %v1231, 4294901760
        %1233 = vmatpush1.msra.mxu0 %v1232
        %1234 = vmatprep.subr.mxu0 0.0
        %1235 = vmatpush1.msra.mxu0 0.0
        %1236 = vmatprep.subr.mxu0 0.0
        %1237 = vmatpush1.msra.mxu0 0.0
        %1238 = vmatprep.subr.mxu0 0.0
        %1239 = vmatpush1.msra.mxu0 0.0
        %1240 = vmatprep.subr.mxu0 0.0
        %1241 = vmatpush1.msra.mxu0 0.0
        %1242 = vmatprep.subr.mxu0 0.0
        %1243 = vmatpush1.msra.mxu0 0.0
        %1244 = vmatprep.subr.mxu0 0.0
        %1245 = vmatpush1.msra.mxu0 0.0
        %1246 = vmatprep.subr.mxu0 0.0
        %1247 = vmatpush1.msra.mxu0 0.0
        %1248 = vmatprep.subr.mxu0 0.0
        %1249 = vmatpush1.msra.mxu0 0.0
        %1250 = vmatprep.subr.mxu0 0.0
        %1251 = vmatpush1.msra.mxu0 0.0
        %1252 = vmatprep.subr.mxu0 0.0
        %1253 = vmatpush1.msra.mxu0 0.0
        %1254 = vmatprep.subr.mxu0 0.0
        %1255 = vmatpush1.msra.mxu0 0.0
        %1256 = vmatprep.subr.mxu0 0.0
        %1257 = vmatpush1.msra.mxu0 0.0
        %1258 = vmatprep.subr.mxu0 0.0
        %1259 = vmatpush1.msra.mxu0 0.0
        %1260 = vmatprep.subr.mxu0 0.0
        %1261 = vmatpush1.msra.mxu0 0.0
        %1262 = vmatprep.subr.mxu0 0.0
        %1263 = vmatpush1.msra.mxu0 0.0
        %1264 = vmatprep.subr.mxu0 0.0
        %1265 = vmatpush1.msra.mxu0 0.0
        %1266 = vmatprep.subr.mxu0 0.0
        %1267 = vmatpush1.msra.mxu0 0.0
        %1268 = vmatprep.subr.mxu0 0.0
        %1269 = vmatpush1.msra.mxu0 0.0
        %1270 = vmatprep.subr.mxu0 0.0
        %1271 = vmatpush1.msra.mxu0 0.0
        %1272 = vmatprep.subr.mxu0 0.0
        %1273 = vmatpush1.msra.mxu0 0.0
        %1274 = vmatprep.subr.mxu0 0.0
        %1275 = vmatpush1.msra.mxu0 0.0
        %1276 = vmatprep.subr.mxu0 0.0
        %1277 = vmatpush1.msra.mxu0 0.0
        %1278 = vmatprep.mubr.f32.mxu0 0.0
        %v1279 = vand.u32 %v801, 4294901760
        %1280 = vmatmul.mubr.f32.gmra.mrb[0].mxu0 %v1279
        %v1281 = vpop.f32.mrb[0].mxu0
        %v1282 = vadd.f32 %v1181, %v1281
        %v1283 = vpop.f32.mrb[0].mxu0
        %1284 = vdwg.mxu0
        %1285 = vmatprep.subr.mxu0 0.0
        %v1286 = vand.u32 %v789, 4294901760
        %1287 = vmatpush1.msra.mxu0 %v1286
        %1288 = vmatprep.subr.mxu0 0.0
        %v1289 = vand.u32 %v790, 4294901760
        %1290 = vmatpush1.msra.mxu0 %v1289
        %1291 = vmatprep.subr.mxu0 0.0
        %v1292 = vand.u32 %v791, 4294901760
        %1293 = vmatpush1.msra.mxu0 %v1292
        %1294 = vmatprep.subr.mxu0 0.0
        %v1295 = vand.u32 %v792, 4294901760
        %1296 = vmatpush1.msra.mxu0 %v1295
        %1297 = vmatprep.subr.mxu0 0.0
        %v1298 = vand.u32 %v793, 4294901760
        %1299 = vmatpush1.msra.mxu0 %v1298
        %1300 = vmatprep.subr.mxu0 0.0
        %v1301 = vand.u32 %v794, 4294901760
        %1302 = vmatpush1.msra.mxu0 %v1301
        %1303 = vmatprep.subr.mxu0 0.0
        %v1304 = vand.u32 %v795, 4294901760
        %1305 = vmatpush1.msra.mxu0 %v1304
        %1306 = vmatprep.subr.mxu0 0.0
        %v1307 = vand.u32 %v796, 4294901760
        %1308 = vmatpush1.msra.mxu0 %v1307
        %1309 = vmatprep.subr.mxu0 0.0
        %v1310 = vand.u32 %v797, 4294901760
        %1311 = vmatpush1.msra.mxu0 %v1310
        %1312 = vmatprep.subr.mxu0 0.0
        %v1313 = vand.u32 %v798, 4294901760
        %1314 = vmatpush1.msra.mxu0 %v1313
        %1315 = vmatprep.subr.mxu0 0.0
        %1316 = vmatpush1.msra.mxu0 0.0
        %1317 = vmatprep.subr.mxu0 0.0
        %1318 = vmatpush1.msra.mxu0 0.0
        %1319 = vmatprep.subr.mxu0 0.0
        %1320 = vmatpush1.msra.mxu0 0.0
        %1321 = vmatprep.subr.mxu0 0.0
        %1322 = vmatpush1.msra.mxu0 0.0
        %1323 = vmatprep.subr.mxu0 0.0
        %1324 = vmatpush1.msra.mxu0 0.0
        %1325 = vmatprep.subr.mxu0 0.0
        %1326 = vmatpush1.msra.mxu0 0.0
        %1327 = vmatprep.subr.mxu0 0.0
        %1328 = vmatpush1.msra.mxu0 0.0
        %1329 = vmatprep.subr.mxu0 0.0
        %1330 = vmatpush1.msra.mxu0 0.0
        %1331 = vmatprep.subr.mxu0 0.0
        %1332 = vmatpush1.msra.mxu0 0.0
        %1333 = vmatprep.subr.mxu0 0.0
        %1334 = vmatpush1.msra.mxu0 0.0
        %1335 = vmatprep.subr.mxu0 0.0
        %1336 = vmatpush1.msra.mxu0 0.0
        %1337 = vmatprep.subr.mxu0 0.0
        %1338 = vmatpush1.msra.mxu0 0.0
        %1339 = vmatprep.subr.mxu0 0.0
        %1340 = vmatpush1.msra.mxu0 0.0
        %1341 = vmatprep.subr.mxu0 0.0
        %1342 = vmatpush1.msra.mxu0 0.0
        %1343 = vmatprep.subr.mxu0 0.0
        %1344 = vmatpush1.msra.mxu0 0.0
        %1345 = vmatprep.subr.mxu0 0.0
        %1346 = vmatpush1.msra.mxu0 0.0
        %1347 = vmatprep.subr.mxu0 0.0
        %1348 = vmatpush1.msra.mxu0 0.0
        %1349 = vmatprep.subr.mxu0 0.0
        %1350 = vmatpush1.msra.mxu0 0.0
        %1351 = vmatprep.subr.mxu0 0.0
        %1352 = vmatpush1.msra.mxu0 0.0
        %1353 = vmatprep.subr.mxu0 0.0
        %1354 = vmatpush1.msra.mxu0 0.0
        %1355 = vmatprep.subr.mxu0 0.0
        %1356 = vmatpush1.msra.mxu0 0.0
        %1357 = vmatprep.subr.mxu0 0.0
        %1358 = vmatpush1.msra.mxu0 0.0
        %1359 = vmatprep.mubr.f32.mxu0 0.0
        %v1360 = vand.u32 %v801, 4294901760
        %1361 = vmatmul.mubr.f32.gmra.mrb[0].mxu0 %v1360
        %v1362 = vpop.f32.mrb[0].mxu0
        %v1363 = vadd.f32 %v1282, %v1362
        %v1364 = vpop.f32.mrb[0].mxu0
        %1365 = vdwg.mxu0
        %vm1366 = vcmask 261120
        %1367 = vst.msk [vmem:[%s188] sm:$0xff] %vm1366, %v756
        %1369 = vrot.lane.b32.xlu0 %v762, 32
        %v1370 = vpop.permute.xlu0 %1369
        %vm1372 = vcmask 523520
        %1373 = vst.msk [vmem:[%s188] sm:$0xff] %vm1372, %v1370
        %1375 = vrot.lane.b32.xlu0 %v1363, 64
        %v1376 = vpop.permute.xlu0 %1375
        %vm1378 = vcmask 654848
        %1379 = vst.msk [vmem:[%s188] sm:$0xff] %vm1378, %v1376
        %1381 = vrot.lane.b32.xlu0 %v768, 80
        %v1382 = vpop.permute.xlu0 %1381
        %vm1384 = vcmask 917120
        %1385 = vst.msk [vmem:[%s188] sm:$0xff] %vm1384, %v1382
        %1386 = vrot.lane.b32.xlu0 %v1363, 96
        %v1387 = vpop.permute.xlu0 %1386
        %vm1389 = vcmask 1048448
        %1390 = vst.msk [vmem:[%s188] sm:$0xff] %vm1389, %v1387
        %1391 = vst.msk [vmem:[%s188 + $0x8] sm:$0xff] %vm229, %v1387
        %s1392 = sand.u32 %s112, 1
        %s1393 = scalar_lea.sflag [#allocation3], %s1392
        %s1394 = sand.u32 %s112, 1
        %s1395 = smul.addr %s1394, 16
        %s1396 = scalar_lea.vmem [#allocation2], %s1395
        // Predicated region
        $region33: #{tpu_custom_call.1} parent=31 // pred_check
          %p1397 = pneg %p122
        $region34: #{tpu_custom_call.1} parent=31 // pred_check_branch
          %1399 = sbr.rel (%p1397) target = $region36
        $region35: #{tpu_custom_call.1} parent=31 // pred_region
          %s1401 = ssub.s32 256, 256
          %1402 = vsyncadd %s1393, %s1401
          %s1403 = smul.addr %s22, 2
          %s1404 = smul.addr %s21, 2
          %s1405 = sadd.s32 %s1403, %s1404
          %s1406 = smul.addr %s1405, 128
          %s1407 = scalar_lea.hbm %s3, %s1406
          %s1409 = sshll.u32 %s1396, 4
          %s1410 = int_to_ptr.vmem [resolvable:$true] %s1409
          %1412 = dma.vmem_to_hbm [thread:$0]  %s1410, 256, %s1407, %s1393
        $region36: #{tpu_custom_call.1} parent=31 // pred_fallthru
          _
      $region32: #{tpu_custom_call.1} parent=5 // pred_fallthru
        _
      %p1413 = scmp.le.s32.totalorder 2, %s12
      // Predicated region
      $region37: #{tpu_custom_call.1} parent=5 // pred_check
        %p1414 = pneg %p1413
      $region38: #{tpu_custom_call.1} parent=5 // pred_check_branch
        %1416 = sbr.rel (%p1414) target = $region40
      $region39: #{tpu_custom_call.1} parent=5 // pred_region
        %s1417 = ssub.s32 %s12, 2
        // Predicated region
        $region41: #{tpu_custom_call.1} parent=39 // pred_check
          %p1418 = pneg %p128
        $region42: #{tpu_custom_call.1} parent=39 // pred_check_branch
          %1420 = sbr.rel (%p1418) target = $region44
        $region43: #{tpu_custom_call.1} parent=39 // pred_region
          %s1421 = sand.u32 %s113, 1
          %s1422 = scalar_lea.sflag [#allocation3], %s1421
          %s1423 = sand.u32 %s113, 1
          %s1424 = smul.addr %s1423, 16
          %s1425 = scalar_lea.vmem [#allocation2], %s1424
          %1426 = dma.done %s1422, 256
        $region44: #{tpu_custom_call.1} parent=39 // pred_fallthru
          _
      $region40: #{tpu_custom_call.1} parent=5 // pred_fallthru
        _
    $region6: #{tpu_custom_call.1} parent=1 // loop_footer
      %s16 = sadd.s32 1, %s12
    $region7: #{tpu_custom_call.1} parent=1 // loop_footer_branch
      %11 = sbr.rel target = $region3
    $region8: #{tpu_custom_call.1} parent=1 // loop_exit
      _
    %1427 = vsyncpa [#allocation3], 1
    %s1428 = scalar_lea.sflag [#allocation3], 1
    %1429 = vsyncpa %s1428, 1

</llo_original>
